<compile_context>
chip_gen: v7x
topology: tpu7x:2x2x1
jax: 0.10.0
libtpu: 0.0.40
codegen_flags: <defaults>
</compile_context>

<pallas_src>
import numpy as np
import jax
import jax.numpy as jnp
from jax.experimental import pallas as pl
from jax.experimental.pallas import tpu as pltpu


# ---------------------------------------------------------------------------
# Host-side construction of the (static, data-independent) resampling matrices.
# ---------------------------------------------------------------------------
def adaptive_pool_matrix(in_h, in_w, s):
    """Matrix P: (s*s, in_h*in_w) implementing nn.AdaptiveAvgPool2d((s, s))."""
    P = np.zeros((s * s, in_h * in_w), np.float32)
    for i in range(s):
        h0 = (i * in_h) // s
        h1 = ((i + 1) * in_h + s - 1) // s
        for j in range(s):
            w0 = (j * in_w) // s
            w1 = ((j + 1) * in_w + s - 1) // s
            area = (h1 - h0) * (w1 - w0)
            for hh in range(h0, h1):
                for ww in range(w0, w1):
                    P[i * s + j, hh * in_w + ww] = 1.0 / area
    return P


def bilinear_upsample_matrix(s_h, s_w, out_h, out_w):
    """Matrix U: (out_h*out_w, s_h*s_w) for bilinear upsample, align_corners=False
    (matches F.upsample/F.interpolate(mode='bilinear') default)."""
    U = np.zeros((out_h * out_w, s_h * s_w), np.float32)
    scale_h = s_h / out_h
    scale_w = s_w / out_w
    for y in range(out_h):
        sy = max((y + 0.5) * scale_h - 0.5, 0.0)
        y0 = min(int(np.floor(sy)), s_h - 1)
        y1 = min(y0 + 1, s_h - 1)
        ly = sy - y0
        for x in range(out_w):
            sx = max((x + 0.5) * scale_w - 0.5, 0.0)
            x0 = min(int(np.floor(sx)), s_w - 1)
            x1 = min(x0 + 1, s_w - 1)
            lx = sx - x0
            r = y * out_w + x
            U[r, y0 * s_w + x0] += (1.0 - ly) * (1.0 - lx)
            U[r, y0 * s_w + x1] += (1.0 - ly) * lx
            U[r, y1 * s_w + x0] += ly * (1.0 - lx)
            U[r, y1 * s_w + x1] += ly * lx
    return U


# ---------------------------------------------------------------------------
# Pallas kernel: per-batch pyramid pool -> stage conv -> upsample -> bottleneck.
# Channels-first: C / Cout live on sublanes, HW lives on lanes (lane-dense).
# ---------------------------------------------------------------------------
def psp_kernel(x_ref, pt_ref, ut_ref, wstg_ref, wb_ref, bias_ref, o_ref):
    # x_ref:    (1, C, HW)       bf16 channels-first features of current batch elem
    # pt_ref:   (S, HW, s2p)     bf16 P_s^T, zero-padded to s2p = max(s^2) columns
    # ut_ref:   (S, s2p, HW)     bf16 U_s^T, zero-padded to s2p rows
    # wstg_ref: (S, C, C)        bf16 stage 1x1-conv weights W_s (no bias)
    # wb_ref:   (S+1, Cout, C)   bf16 bottleneck 1x1-conv weight, chunked by concat group
    # bias_ref: (Cout, 1)        f32 bottleneck bias (broadcast over HW lanes)
    # o_ref:    (1, Cout, HW)    f32 output
    x = x_ref[0]                                                  # (C, HW) bf16
    n_stages = pt_ref.shape[0]

    # Bottleneck contribution of the original (un-pooled) features (last concat group).
    acc = jnp.dot(wb_ref[n_stages], x,
                  preferred_element_type=jnp.float32)             # (Cout, HW) f32

    # Pyramid stages (static unroll over the 4 sizes).  Padded s^2 columns/rows
    # are zero in pt/ut, so they contribute exactly nothing.
    for s in range(n_stages):
        pooled = jnp.dot(x, pt_ref[s],
                         preferred_element_type=jnp.float32)      # (C, s2p)
        prior = jnp.dot(wstg_ref[s], pooled.astype(x.dtype),
                        preferred_element_type=jnp.float32)       # (C, s2p)
        up = jnp.dot(prior.astype(x.dtype), ut_ref[s],
                     preferred_element_type=jnp.float32)          # (C, HW)
        acc = acc + jnp.dot(wb_ref[s], up.astype(x.dtype),
                            preferred_element_type=jnp.float32)   # (Cout, HW)

    acc = acc + bias_ref[...]                                     # (Cout, 1) broadcast
    o_ref[0] = jnp.maximum(acc, 0.0).astype(o_ref.dtype)          # ReLU


def psp_forward(x_nchw, Pt_all, Ut_all, Wstg, Wb_chunks, bias_col,
                compute_dtype=jnp.bfloat16):
    """x_nchw: (B, C, H, W) f32 -> (B, Cout, H, W) f32."""
    B, C, H, W = x_nchw.shape
    HW = H * W
    S, _, s2p = Pt_all.shape
    Cout = bias_col.shape[0]

    # NCHW -> (B, C, HW): a free, contiguous reshape (no HBM transpose round-trip).
    x_cf = x_nchw.reshape(B, C, HW).astype(compute_dtype)
    pt = Pt_all.astype(compute_dtype)
    ut = Ut_all.astype(compute_dtype)
    wstg = Wstg.astype(compute_dtype)
    wb = Wb_chunks.astype(compute_dtype)
    bias = bias_col.astype(jnp.float32)

    # TODO(synk): for production PSPNet shapes (C~2048, HW~3600) add an HW-tile
    # grid axis for x/out and single-buffer the grid-invariant weight/resample
    # inputs (pipeline_mode=pl.Buffered(1)) to fit v7x's 64 MiB VMEM.
    out = pl.pallas_call(
        psp_kernel,
        out_shape=jax.ShapeDtypeStruct((B, Cout, HW), jnp.float32),
        grid_spec=pltpu.PrefetchScalarGridSpec(
            num_scalar_prefetch=0,
            grid=(B,),
            in_specs=[
                pl.BlockSpec((1, C, HW), lambda b: (b, 0, 0)),
                pl.BlockSpec((S, HW, s2p), lambda b: (0, 0, 0)),
                pl.BlockSpec((S, s2p, HW), lambda b: (0, 0, 0)),
                pl.BlockSpec((S, C, C), lambda b: (0, 0, 0)),
                pl.BlockSpec((S + 1, Cout, C), lambda b: (0, 0, 0)),
                pl.BlockSpec((Cout, 1), lambda b: (0, 0)),
            ],
            out_specs=pl.BlockSpec((1, Cout, HW), lambda b: (b, 0, 0)),
        ),
        compiler_params=pltpu.CompilerParams(
            dimension_semantics=("parallel",)),
    )(x_cf, pt, ut, wstg, wb, bias)

    # (B, Cout, HW) -> NCHW via a free reshape.
    return out.reshape(B, Cout, H, W)


# ---------------------------------------------------------------------------
# Pure-JAX f32 reference (faithful to PyTorch op order: pool -> conv -> upsample).
# ---------------------------------------------------------------------------
def psp_reference(x_nchw, P_list, U_list, Wstg, Wb, bias):
    B, C, H, W = x_nchw.shape
    xf = x_nchw.reshape(B, C, H * W)
    priors = []
    for i in range(len(P_list)):
        pooled = jnp.einsum('ph,bch->bcp', P_list[i], xf)      # adaptive avg pool
        conv = jnp.einsum('oc,bcp->bop', Wstg[i], pooled)       # 1x1 conv (no bias)
        up = jnp.einsum('hp,bop->boh', U_list[i], conv)         # bilinear upsample
        priors.append(up)
    cat = jnp.concatenate(priors + [xf], axis=1)                # channel concat
    bottle = jnp.einsum('oc,bch->boh', Wb, cat) + bias[None, :, None]
    return jnp.maximum(bottle, 0.0).reshape(B, -1, H, W)


if __name__ == "__main__":
    # Small shapes consistent with the module's forward.
    B, C, H, W = 2, 4, 16, 16
    sizes = (1, 2, 3, 6)
    Cout = 32                      # out_features (kept small for the demo)
    S = len(sizes)
    HW = H * W
    smax2 = max(s * s for s in sizes)

    # Deterministic parameter init (synthetic; shapes from __init__).
    key = jax.random.PRNGKey(0)
    k_x, k_ws, k_wb, k_b = jax.random.split(key, 4)
    x = jax.random.normal(k_x, (B, C, H, W), jnp.float32)
    Wstg = jax.random.normal(k_ws, (S, C, C), jnp.float32) * 0.3          # stage 1x1 convs
    Wb = jax.random.normal(k_wb, (Cout, C * (S + 1)), jnp.float32) * 0.2  # bottleneck 1x1 conv
    bias = jax.random.normal(k_b, (Cout,), jnp.float32) * 0.1

    # Static resampling operators, kept factored (P and U separate), zero-padded
    # along the s^2 axis so all stages share one stacked tensor.
    P_np = [adaptive_pool_matrix(H, W, s) for s in sizes]
    U_np = [bilinear_upsample_matrix(s, s, H, W) for s in sizes]
    Pt_all = np.zeros((S, HW, smax2), np.float32)
    Ut_all = np.zeros((S, smax2, HW), np.float32)
    for i, s in enumerate(sizes):
        Pt_all[i, :, : s * s] = P_np[i].T
        Ut_all[i, : s * s, :] = U_np[i].T
    Pt_all = jnp.asarray(Pt_all)
    Ut_all = jnp.asarray(Ut_all)

    # Kernel-friendly parameter layouts (channels-first).
    Wb_chunks = jnp.transpose(Wb.reshape(Cout, S + 1, C), (1, 0, 2))   # (S+1, Cout, C)
    bias_col = bias.reshape(Cout, 1)

    out = psp_forward(x, Pt_all, Ut_all, Wstg, Wb_chunks, bias_col)
    out = jax.block_until_ready(out)

    P_list = [jnp.asarray(p) for p in P_np]
    U_list = [jnp.asarray(u) for u in U_np]
    ref = psp_reference(x, P_list, U_list, Wstg, Wb, bias)
    ref = jax.block_until_ready(ref)

    assert out.shape == (B, Cout, H, W), out.shape
    err = float(np.max(np.abs(np.asarray(out) - np.asarray(ref))))
    # bf16 matmul operands with f32 accumulation -> slightly looser tolerance.
    assert np.allclose(np.asarray(out), np.asarray(ref), rtol=4e-2, atol=4e-2), (
        "max abs diff %g" % err)

    print("KERNEL_OK")
</pallas_src>

<mosaic_0001>
module attributes {stable_mosaic.version = 11 : i64} {
  func.func @psp_kernel(%arg0: i32, %arg1: memref<1x4x256xbf16, #tpu.memory_space<vmem>>, %arg2: memref<4x256x36xbf16, #tpu.memory_space<vmem>>, %arg3: memref<4x36x256xbf16, #tpu.memory_space<vmem>>, %arg4: memref<4x4x4xbf16, #tpu.memory_space<vmem>>, %arg5: memref<5x32x4xbf16, #tpu.memory_space<vmem>>, %arg6: memref<32x1xf32, #tpu.memory_space<vmem>>, %arg7: memref<1x32x256xf32, #tpu.memory_space<vmem>>) attributes {dimension_semantics = [#tpu.dimension_semantics<parallel>], iteration_bounds = array<i64: 2>, scalar_prefetch = 0 : i64, scratch_operands = 0 : i64, tpu.core_type = #tpu.core_type<tc>, window_params = [{transform_indices = @transform_0, window_bounds = array<i64: 1, 4, 256>}, {pipeline_mode = #tpu.pipeline_mode<synchronous>, transform_indices = @transform_1, window_bounds = array<i64: 4, 256, 36>}, {pipeline_mode = #tpu.pipeline_mode<synchronous>, transform_indices = @transform_2, window_bounds = array<i64: 4, 36, 256>}, {pipeline_mode = #tpu.pipeline_mode<synchronous>, transform_indices = @transform_3, window_bounds = array<i64: 4, 4, 4>}, {pipeline_mode = #tpu.pipeline_mode<synchronous>, transform_indices = @transform_4, window_bounds = array<i64: 5, 32, 4>}, {pipeline_mode = #tpu.pipeline_mode<synchronous>, transform_indices = @transform_5, window_bounds = array<i64: 32, 1>}, {transform_indices = @transform_6, window_bounds = array<i64: 1, 32, 256>}]} {
    %c0 = arith.constant 0 : index
    %c0_0 = arith.constant 0 : index
    %c0_1 = arith.constant 0 : index
    %0 = vector.load %arg1[%c0, %c0_0, %c0_1] : memref<1x4x256xbf16, #tpu.memory_space<vmem>>, vector<1x4x256xbf16>
    %1 = vector.shape_cast %0 : vector<1x4x256xbf16> to vector<4x256xbf16>
    %c4 = arith.constant 4 : index
    %c0_2 = arith.constant 0 : index
    %c0_3 = arith.constant 0 : index
    %2 = vector.load %arg5[%c4, %c0_2, %c0_3] : memref<5x32x4xbf16, #tpu.memory_space<vmem>>, vector<1x32x4xbf16>
    %3 = vector.shape_cast %2 : vector<1x32x4xbf16> to vector<32x4xbf16>
    %cst = arith.constant dense<0.000000e+00> : vector<32x256xf32>
    %4 = tpu.matmul %3, %1, %cst {dimension_numbers = #tpu.dot_dimension_numbers<[1], [0], [0], [1], [0, 0, 1, 1], [], []>} : vector<32x4xbf16>, vector<4x256xbf16>, vector<32x256xf32> -> vector<32x256xf32>
    %c0_4 = arith.constant 0 : index
    %c0_5 = arith.constant 0 : index
    %c0_6 = arith.constant 0 : index
    %5 = vector.load %arg2[%c0_4, %c0_5, %c0_6] : memref<4x256x36xbf16, #tpu.memory_space<vmem>>, vector<1x256x36xbf16>
    %6 = vector.shape_cast %5 : vector<1x256x36xbf16> to vector<256x36xbf16>
    %cst_7 = arith.constant dense<0.000000e+00> : vector<4x36xf32>
    %7 = tpu.matmul %1, %6, %cst_7 {dimension_numbers = #tpu.dot_dimension_numbers<[1], [0], [0], [1], [0, 0, 1, 1], [], []>} : vector<4x256xbf16>, vector<256x36xbf16>, vector<4x36xf32> -> vector<4x36xf32>
    %c0_8 = arith.constant 0 : index
    %c0_9 = arith.constant 0 : index
    %c0_10 = arith.constant 0 : index
    %8 = vector.load %arg4[%c0_8, %c0_9, %c0_10] : memref<4x4x4xbf16, #tpu.memory_space<vmem>>, vector<1x4x4xbf16>
    %9 = vector.shape_cast %8 : vector<1x4x4xbf16> to vector<4x4xbf16>
    %10 = arith.truncf %7 : vector<4x36xf32> to vector<4x36xbf16>
    %cst_11 = arith.constant dense<0.000000e+00> : vector<4x36xf32>
    %11 = tpu.matmul %9, %10, %cst_11 {dimension_numbers = #tpu.dot_dimension_numbers<[1], [0], [0], [1], [0, 0, 1, 1], [], []>} : vector<4x4xbf16>, vector<4x36xbf16>, vector<4x36xf32> -> vector<4x36xf32>
    %12 = arith.truncf %11 : vector<4x36xf32> to vector<4x36xbf16>
    %c0_12 = arith.constant 0 : index
    %c0_13 = arith.constant 0 : index
    %c0_14 = arith.constant 0 : index
    %13 = vector.load %arg3[%c0_12, %c0_13, %c0_14] : memref<4x36x256xbf16, #tpu.memory_space<vmem>>, vector<1x36x256xbf16>
    %14 = vector.shape_cast %13 : vector<1x36x256xbf16> to vector<36x256xbf16>
    %cst_15 = arith.constant dense<0.000000e+00> : vector<4x256xf32>
    %15 = tpu.matmul %12, %14, %cst_15 {dimension_numbers = #tpu.dot_dimension_numbers<[1], [0], [0], [1], [0, 0, 1, 1], [], []>} : vector<4x36xbf16>, vector<36x256xbf16>, vector<4x256xf32> -> vector<4x256xf32>
    %c0_16 = arith.constant 0 : index
    %c0_17 = arith.constant 0 : index
    %c0_18 = arith.constant 0 : index
    %16 = vector.load %arg5[%c0_16, %c0_17, %c0_18] : memref<5x32x4xbf16, #tpu.memory_space<vmem>>, vector<1x32x4xbf16>
    %17 = vector.shape_cast %16 : vector<1x32x4xbf16> to vector<32x4xbf16>
    %18 = arith.truncf %15 : vector<4x256xf32> to vector<4x256xbf16>
    %cst_19 = arith.constant dense<0.000000e+00> : vector<32x256xf32>
    %19 = tpu.matmul %17, %18, %cst_19 {dimension_numbers = #tpu.dot_dimension_numbers<[1], [0], [0], [1], [0, 0, 1, 1], [], []>} : vector<32x4xbf16>, vector<4x256xbf16>, vector<32x256xf32> -> vector<32x256xf32>
    %20 = arith.addf %4, %19 : vector<32x256xf32>
    %c1 = arith.constant 1 : index
    %c0_20 = arith.constant 0 : index
    %c0_21 = arith.constant 0 : index
    %21 = vector.load %arg2[%c1, %c0_20, %c0_21] : memref<4x256x36xbf16, #tpu.memory_space<vmem>>, vector<1x256x36xbf16>
    %22 = vector.shape_cast %21 : vector<1x256x36xbf16> to vector<256x36xbf16>
    %cst_22 = arith.constant dense<0.000000e+00> : vector<4x36xf32>
    %23 = tpu.matmul %1, %22, %cst_22 {dimension_numbers = #tpu.dot_dimension_numbers<[1], [0], [0], [1], [0, 0, 1, 1], [], []>} : vector<4x256xbf16>, vector<256x36xbf16>, vector<4x36xf32> -> vector<4x36xf32>
    %c1_23 = arith.constant 1 : index
    %c0_24 = arith.constant 0 : index
    %c0_25 = arith.constant 0 : index
    %24 = vector.load %arg4[%c1_23, %c0_24, %c0_25] : memref<4x4x4xbf16, #tpu.memory_space<vmem>>, vector<1x4x4xbf16>
    %25 = vector.shape_cast %24 : vector<1x4x4xbf16> to vector<4x4xbf16>
    %26 = arith.truncf %23 : vector<4x36xf32> to vector<4x36xbf16>
    %cst_26 = arith.constant dense<0.000000e+00> : vector<4x36xf32>
    %27 = tpu.matmul %25, %26, %cst_26 {dimension_numbers = #tpu.dot_dimension_numbers<[1], [0], [0], [1], [0, 0, 1, 1], [], []>} : vector<4x4xbf16>, vector<4x36xbf16>, vector<4x36xf32> -> vector<4x36xf32>
    %28 = arith.truncf %27 : vector<4x36xf32> to vector<4x36xbf16>
    %c1_27 = arith.constant 1 : index
    %c0_28 = arith.constant 0 : index
    %c0_29 = arith.constant 0 : index
    %29 = vector.load %arg3[%c1_27, %c0_28, %c0_29] : memref<4x36x256xbf16, #tpu.memory_space<vmem>>, vector<1x36x256xbf16>
    %30 = vector.shape_cast %29 : vector<1x36x256xbf16> to vector<36x256xbf16>
    %cst_30 = arith.constant dense<0.000000e+00> : vector<4x256xf32>
    %31 = tpu.matmul %28, %30, %cst_30 {dimension_numbers = #tpu.dot_dimension_numbers<[1], [0], [0], [1], [0, 0, 1, 1], [], []>} : vector<4x36xbf16>, vector<36x256xbf16>, vector<4x256xf32> -> vector<4x256xf32>
    %c1_31 = arith.constant 1 : index
    %c0_32 = arith.constant 0 : index
    %c0_33 = arith.constant 0 : index
    %32 = vector.load %arg5[%c1_31, %c0_32, %c0_33] : memref<5x32x4xbf16, #tpu.memory_space<vmem>>, vector<1x32x4xbf16>
    %33 = vector.shape_cast %32 : vector<1x32x4xbf16> to vector<32x4xbf16>
    %34 = arith.truncf %31 : vector<4x256xf32> to vector<4x256xbf16>
    %cst_34 = arith.constant dense<0.000000e+00> : vector<32x256xf32>
    %35 = tpu.matmul %33, %34, %cst_34 {dimension_numbers = #tpu.dot_dimension_numbers<[1], [0], [0], [1], [0, 0, 1, 1], [], []>} : vector<32x4xbf16>, vector<4x256xbf16>, vector<32x256xf32> -> vector<32x256xf32>
    %36 = arith.addf %20, %35 : vector<32x256xf32>
    %c2 = arith.constant 2 : index
    %c0_35 = arith.constant 0 : index
    %c0_36 = arith.constant 0 : index
    %37 = vector.load %arg2[%c2, %c0_35, %c0_36] : memref<4x256x36xbf16, #tpu.memory_space<vmem>>, vector<1x256x36xbf16>
    %38 = vector.shape_cast %37 : vector<1x256x36xbf16> to vector<256x36xbf16>
    %cst_37 = arith.constant dense<0.000000e+00> : vector<4x36xf32>
    %39 = tpu.matmul %1, %38, %cst_37 {dimension_numbers = #tpu.dot_dimension_numbers<[1], [0], [0], [1], [0, 0, 1, 1], [], []>} : vector<4x256xbf16>, vector<256x36xbf16>, vector<4x36xf32> -> vector<4x36xf32>
    %c2_38 = arith.constant 2 : index
    %c0_39 = arith.constant 0 : index
    %c0_40 = arith.constant 0 : index
    %40 = vector.load %arg4[%c2_38, %c0_39, %c0_40] : memref<4x4x4xbf16, #tpu.memory_space<vmem>>, vector<1x4x4xbf16>
    %41 = vector.shape_cast %40 : vector<1x4x4xbf16> to vector<4x4xbf16>
    %42 = arith.truncf %39 : vector<4x36xf32> to vector<4x36xbf16>
    %cst_41 = arith.constant dense<0.000000e+00> : vector<4x36xf32>
    %43 = tpu.matmul %41, %42, %cst_41 {dimension_numbers = #tpu.dot_dimension_numbers<[1], [0], [0], [1], [0, 0, 1, 1], [], []>} : vector<4x4xbf16>, vector<4x36xbf16>, vector<4x36xf32> -> vector<4x36xf32>
    %44 = arith.truncf %43 : vector<4x36xf32> to vector<4x36xbf16>
    %c2_42 = arith.constant 2 : index
    %c0_43 = arith.constant 0 : index
    %c0_44 = arith.constant 0 : index
    %45 = vector.load %arg3[%c2_42, %c0_43, %c0_44] : memref<4x36x256xbf16, #tpu.memory_space<vmem>>, vector<1x36x256xbf16>
    %46 = vector.shape_cast %45 : vector<1x36x256xbf16> to vector<36x256xbf16>
    %cst_45 = arith.constant dense<0.000000e+00> : vector<4x256xf32>
    %47 = tpu.matmul %44, %46, %cst_45 {dimension_numbers = #tpu.dot_dimension_numbers<[1], [0], [0], [1], [0, 0, 1, 1], [], []>} : vector<4x36xbf16>, vector<36x256xbf16>, vector<4x256xf32> -> vector<4x256xf32>
    %c2_46 = arith.constant 2 : index
    %c0_47 = arith.constant 0 : index
    %c0_48 = arith.constant 0 : index
    %48 = vector.load %arg5[%c2_46, %c0_47, %c0_48] : memref<5x32x4xbf16, #tpu.memory_space<vmem>>, vector<1x32x4xbf16>
    %49 = vector.shape_cast %48 : vector<1x32x4xbf16> to vector<32x4xbf16>
    %50 = arith.truncf %47 : vector<4x256xf32> to vector<4x256xbf16>
    %cst_49 = arith.constant dense<0.000000e+00> : vector<32x256xf32>
    %51 = tpu.matmul %49, %50, %cst_49 {dimension_numbers = #tpu.dot_dimension_numbers<[1], [0], [0], [1], [0, 0, 1, 1], [], []>} : vector<32x4xbf16>, vector<4x256xbf16>, vector<32x256xf32> -> vector<32x256xf32>
    %52 = arith.addf %36, %51 : vector<32x256xf32>
    %c3 = arith.constant 3 : index
    %c0_50 = arith.constant 0 : index
    %c0_51 = arith.constant 0 : index
    %53 = vector.load %arg2[%c3, %c0_50, %c0_51] : memref<4x256x36xbf16, #tpu.memory_space<vmem>>, vector<1x256x36xbf16>
    %54 = vector.shape_cast %53 : vector<1x256x36xbf16> to vector<256x36xbf16>
    %cst_52 = arith.constant dense<0.000000e+00> : vector<4x36xf32>
    %55 = tpu.matmul %1, %54, %cst_52 {dimension_numbers = #tpu.dot_dimension_numbers<[1], [0], [0], [1], [0, 0, 1, 1], [], []>} : vector<4x256xbf16>, vector<256x36xbf16>, vector<4x36xf32> -> vector<4x36xf32>
    %c3_53 = arith.constant 3 : index
    %c0_54 = arith.constant 0 : index
    %c0_55 = arith.constant 0 : index
    %56 = vector.load %arg4[%c3_53, %c0_54, %c0_55] : memref<4x4x4xbf16, #tpu.memory_space<vmem>>, vector<1x4x4xbf16>
    %57 = vector.shape_cast %56 : vector<1x4x4xbf16> to vector<4x4xbf16>
    %58 = arith.truncf %55 : vector<4x36xf32> to vector<4x36xbf16>
    %cst_56 = arith.constant dense<0.000000e+00> : vector<4x36xf32>
    %59 = tpu.matmul %57, %58, %cst_56 {dimension_numbers = #tpu.dot_dimension_numbers<[1], [0], [0], [1], [0, 0, 1, 1], [], []>} : vector<4x4xbf16>, vector<4x36xbf16>, vector<4x36xf32> -> vector<4x36xf32>
    %60 = arith.truncf %59 : vector<4x36xf32> to vector<4x36xbf16>
    %c3_57 = arith.constant 3 : index
    %c0_58 = arith.constant 0 : index
    %c0_59 = arith.constant 0 : index
    %61 = vector.load %arg3[%c3_57, %c0_58, %c0_59] : memref<4x36x256xbf16, #tpu.memory_space<vmem>>, vector<1x36x256xbf16>
    %62 = vector.shape_cast %61 : vector<1x36x256xbf16> to vector<36x256xbf16>
    %cst_60 = arith.constant dense<0.000000e+00> : vector<4x256xf32>
    %63 = tpu.matmul %60, %62, %cst_60 {dimension_numbers = #tpu.dot_dimension_numbers<[1], [0], [0], [1], [0, 0, 1, 1], [], []>} : vector<4x36xbf16>, vector<36x256xbf16>, vector<4x256xf32> -> vector<4x256xf32>
    %c3_61 = arith.constant 3 : index
    %c0_62 = arith.constant 0 : index
    %c0_63 = arith.constant 0 : index
    %64 = vector.load %arg5[%c3_61, %c0_62, %c0_63] : memref<5x32x4xbf16, #tpu.memory_space<vmem>>, vector<1x32x4xbf16>
    %65 = vector.shape_cast %64 : vector<1x32x4xbf16> to vector<32x4xbf16>
    %66 = arith.truncf %63 : vector<4x256xf32> to vector<4x256xbf16>
    %cst_64 = arith.constant dense<0.000000e+00> : vector<32x256xf32>
    %67 = tpu.matmul %65, %66, %cst_64 {dimension_numbers = #tpu.dot_dimension_numbers<[1], [0], [0], [1], [0, 0, 1, 1], [], []>} : vector<32x4xbf16>, vector<4x256xbf16>, vector<32x256xf32> -> vector<32x256xf32>
    %68 = arith.addf %52, %67 : vector<32x256xf32>
    %c0_65 = arith.constant 0 : index
    %c0_66 = arith.constant 0 : index
    %69 = vector.load %arg6[%c0_65, %c0_66] : memref<32x1xf32, #tpu.memory_space<vmem>>, vector<32x1xf32>
    %70 = vector.broadcast %69 : vector<32x1xf32> to vector<32x256xf32>
    %71 = arith.addf %68, %70 : vector<32x256xf32>
    %cst_67 = arith.constant 0.000000e+00 : f32
    %72 = vector.broadcast %cst_67 : f32 to vector<32x256xf32>
    %73 = arith.maximumf %71, %72 : vector<32x256xf32>
    %c0_68 = arith.constant 0 : index
    %c0_69 = arith.constant 0 : index
    %c0_70 = arith.constant 0 : index
    %74 = vector.load %arg7[%c0_68, %c0_69, %c0_70] : memref<1x32x256xf32, #tpu.memory_space<vmem>>, vector<1x32x256xf32>
    %75 = vector.shape_cast %74 : vector<1x32x256xf32> to vector<32x256xf32>
    %76 = vector.shape_cast %73 : vector<32x256xf32> to vector<1x32x256xf32>
    tpu.vector_store %arg7[%c0_68, %c0_69, %c0_70], %76 {strides = array<i32>} : memref<1x32x256xf32, #tpu.memory_space<vmem>>, vector<1x32x256xf32>,
    return
  }
  func.func @transform_0(%arg0: i32) -> (i32, i32, i32) {
    %c0_i32 = arith.constant 0 : i32
    %c0_i32_0 = arith.constant 0 : i32
    %c0_i32_1 = arith.constant 0 : i32
    return %arg0, %c0_i32, %c0_i32_0 : i32, i32, i32
  }
  func.func @transform_1(%arg0: i32) -> (i32, i32, i32) {
    %c0_i32 = arith.constant 0 : i32
    %c0_i32_0 = arith.constant 0 : i32
    %c0_i32_1 = arith.constant 0 : i32
    %c0_i32_2 = arith.constant 0 : i32
    return %c0_i32, %c0_i32_0, %c0_i32_1 : i32, i32, i32
  }
  func.func @transform_2(%arg0: i32) -> (i32, i32, i32) {
    %c0_i32 = arith.constant 0 : i32
    %c0_i32_0 = arith.constant 0 : i32
    %c0_i32_1 = arith.constant 0 : i32
    %c0_i32_2 = arith.constant 0 : i32
    return %c0_i32, %c0_i32_0, %c0_i32_1 : i32, i32, i32
  }
  func.func @transform_3(%arg0: i32) -> (i32, i32, i32) {
    %c0_i32 = arith.constant 0 : i32
    %c0_i32_0 = arith.constant 0 : i32
    %c0_i32_1 = arith.constant 0 : i32
    %c0_i32_2 = arith.constant 0 : i32
    return %c0_i32, %c0_i32_0, %c0_i32_1 : i32, i32, i32
  }
  func.func @transform_4(%arg0: i32) -> (i32, i32, i32) {
    %c0_i32 = arith.constant 0 : i32
    %c0_i32_0 = arith.constant 0 : i32
    %c0_i32_1 = arith.constant 0 : i32
    %c0_i32_2 = arith.constant 0 : i32
    return %c0_i32, %c0_i32_0, %c0_i32_1 : i32, i32, i32
  }
  func.func @transform_5(%arg0: i32) -> (i32, i32) {
    %c0_i32 = arith.constant 0 : i32
    %c0_i32_0 = arith.constant 0 : i32
    %c0_i32_1 = arith.constant 0 : i32
    return %c0_i32, %c0_i32_0 : i32, i32
  }
  func.func @transform_6(%arg0: i32) -> (i32, i32, i32) {
    %c0_i32 = arith.constant 0 : i32
    %c0_i32_0 = arith.constant 0 : i32
    %c0_i32_1 = arith.constant 0 : i32
    return %arg0, %c0_i32, %c0_i32_0 : i32, i32, i32
  }
}

</mosaic_0001>

<llo_original>
// kernel: tpu_custom_call.1
$region0: #{tpu_custom_call.1}
  #allocation0 [shape = 'u32[]', space=smem, size = 0x4, offset = 0x4, fixed_abs, tag = 'smem constant byte address 0x4 - core index']
  #allocation1 [shape = 'u32[144,128]{1,0:T(1,128)}', space=vmem, size = 0x12000, scoped, tag = 'internal scratch']
  %s0 = inlined_call_operand.vmem [shape: bf16[2,4,256], index: 0, kind: input, shape index: {}]
  %s1 = inlined_call_operand.vmem [shape: bf16[4,256,36], index: 1, kind: input, shape index: {}]
  %s2 = inlined_call_operand.vmem [shape: bf16[4,36,256], index: 2, kind: input, shape index: {}]
  %s3 = inlined_call_operand.vmem [shape: bf16[4,4,4], index: 3, kind: input, shape index: {}]
  %s4 = inlined_call_operand.vmem [shape: bf16[5,32,4], index: 4, kind: input, shape index: {}]
  %s5 = inlined_call_operand.vmem [shape: f32[32,1], index: 5, kind: input, shape index: {}]
  %s6 = inlined_call_operand.hbm [shape: f32[2,32,256], index: 6, kind: output, shape index: {}]
  %s7 = sld [smem:[#allocation0]]
  $region57: #{tpu_custom_call.1} parent=0
    _
  %s9 = ssub.s32 1, %s7
  %s10 = scalar_select 0, %s9, %s7
  $region1: #{tpu_custom_call.1} parent=0
    #allocation2 [shape = 'u8[65536]{0}', space=vmem, size = 0x10000, scoped, tag = 'output window, operand 0']
    #allocation3 [shape = 's32[2]{0}', space=sflag, size = 0x8, scoped, tag = 'scoped memory for tpu_custom_call.1']
    %11 = vsyncpa [#allocation3], 0
    %s12 = scalar_lea.sflag [#allocation3], 1
    %13 = vsyncpa %s12, 0
    loop: start=0, step=1, limit=4
    $region2: #{tpu_custom_call.1} parent=1 // loop_pre_header
      _
    $region3: #{tpu_custom_call.1} parent=1 // loop_header
      %s15 = sphi 0, %s19
      %p16 = scmp.ge.s32.totalorder %s15, 4
      %s25 = sphi 0, %s27
      %s28 = sphi 0, %s25
      %s29 = sphi 0, %s28
      %s45 = sphi 0, %s29
      %s49 = sphi 0, %s49
      %s51 = sphi 0, %s49
      %s52 = sphi 0, %s51
      %s66 = sphi 0, %s52
      %s70 = sphi 0, %s70
      %s72 = sphi 0, %s70
      %s73 = sphi 0, %s72
      %s87 = sphi 0, %s73
      %s91 = sphi 0, %s91
      %s93 = sphi 0, %s91
      %s94 = sphi 0, %s93
      %s108 = sphi 0, %s94
      %s112 = sphi 0, %s112
      %s114 = sphi 0, %s112
      %s115 = sphi 0, %s114
      %s129 = sphi 0, %s115
      %s133 = sphi 0, %s133
      %s135 = sphi 0, %s133
      %s136 = sphi 0, %s135
      %s150 = sphi 0, %s136
      %s156 = sphi 0, %s158
      %s159 = sphi 0, %s156
      %s160 = sphi 0, %s159
      %s176 = sphi 0, %s160
    $region4: #{tpu_custom_call.1} parent=1 // loop_header_branch
      %18 = sbr.rel (%p16) target = $region8
    $region5: #{tpu_custom_call.1} parent=1 // loop_body
      %s20 = ssub.s32 %s15, 1
      %s21 = ssub.s32 %s15, 2
      %s22 = sadd.s32 %s15, 1
      %s23 = ssub.s32 %s15, %s22
      %p24 = scmp.eq.s32.totalorder %s23, 0
      %s26 = sadd.s32 %s25, 1
      %s27 = scalar_select %p24, %s25, %s26
      %p30 = pneg %p24
      %p31 = scmp.eq.s32.totalorder %s15, 1
      %p32 = por %p30, %p31
      %p33 = scmp.ne.s32.totalorder %s25, %s28
      %p34 = scmp.eq.s32.totalorder %s15, 0
      %p35 = por %p33, %p34
      %p36 = scmp.ne.s32.totalorder %s25, %s28
      %p37 = scmp.eq.s32.totalorder %s20, 1
      %p38 = por %p36, %p37
      %p39 = scmp.ne.s32.totalorder %s28, %s29
      %p40 = scmp.eq.s32.totalorder %s20, 0
      %p41 = por %p39, %p40
      %p42 = scmp.ne.s32.totalorder %s28, %s29
      %p43 = scmp.eq.s32.totalorder %s21, 1
      %p44 = por %p42, %p43
      %p46 = scmp.ne.s32.totalorder %s29, %s45
      %p47 = scmp.eq.s32.totalorder %s21, 0
      %p48 = por %p46, %p47
      %s50 = sadd.s32 %s49, 1
      %p53 = scmp.eq.s32.totalorder %s15, 1
      %p54 = scmp.ne.s32.totalorder %s49, %s51
      %p55 = scmp.eq.s32.totalorder %s15, 0
      %p56 = por %p54, %p55
      %p57 = scmp.ne.s32.totalorder %s49, %s51
      %p58 = scmp.eq.s32.totalorder %s20, 1
      %p59 = por %p57, %p58
      %p60 = scmp.ne.s32.totalorder %s51, %s52
      %p61 = scmp.eq.s32.totalorder %s20, 0
      %p62 = por %p60, %p61
      %p63 = scmp.ne.s32.totalorder %s51, %s52
      %p64 = scmp.eq.s32.totalorder %s21, 1
      %p65 = por %p63, %p64
      %p67 = scmp.ne.s32.totalorder %s52, %s66
      %p68 = scmp.eq.s32.totalorder %s21, 0
      %p69 = por %p67, %p68
      %s71 = sadd.s32 %s70, 1
      %p74 = scmp.eq.s32.totalorder %s15, 1
      %p75 = scmp.ne.s32.totalorder %s70, %s72
      %p76 = scmp.eq.s32.totalorder %s15, 0
      %p77 = por %p75, %p76
      %p78 = scmp.ne.s32.totalorder %s70, %s72
      %p79 = scmp.eq.s32.totalorder %s20, 1
      %p80 = por %p78, %p79
      %p81 = scmp.ne.s32.totalorder %s72, %s73
      %p82 = scmp.eq.s32.totalorder %s20, 0
      %p83 = por %p81, %p82
      %p84 = scmp.ne.s32.totalorder %s72, %s73
      %p85 = scmp.eq.s32.totalorder %s21, 1
      %p86 = por %p84, %p85
      %p88 = scmp.ne.s32.totalorder %s73, %s87
      %p89 = scmp.eq.s32.totalorder %s21, 0
      %p90 = por %p88, %p89
      %s92 = sadd.s32 %s91, 1
      %p95 = scmp.eq.s32.totalorder %s15, 1
      %p96 = scmp.ne.s32.totalorder %s91, %s93
      %p97 = scmp.eq.s32.totalorder %s15, 0
      %p98 = por %p96, %p97
      %p99 = scmp.ne.s32.totalorder %s91, %s93
      %p100 = scmp.eq.s32.totalorder %s20, 1
      %p101 = por %p99, %p100
      %p102 = scmp.ne.s32.totalorder %s93, %s94
      %p103 = scmp.eq.s32.totalorder %s20, 0
      %p104 = por %p102, %p103
      %p105 = scmp.ne.s32.totalorder %s93, %s94
      %p106 = scmp.eq.s32.totalorder %s21, 1
      %p107 = por %p105, %p106
      %p109 = scmp.ne.s32.totalorder %s94, %s108
      %p110 = scmp.eq.s32.totalorder %s21, 0
      %p111 = por %p109, %p110
      %s113 = sadd.s32 %s112, 1
      %p116 = scmp.eq.s32.totalorder %s15, 1
      %p117 = scmp.ne.s32.totalorder %s112, %s114
      %p118 = scmp.eq.s32.totalorder %s15, 0
      %p119 = por %p117, %p118
      %p120 = scmp.ne.s32.totalorder %s112, %s114
      %p121 = scmp.eq.s32.totalorder %s20, 1
      %p122 = por %p120, %p121
      %p123 = scmp.ne.s32.totalorder %s114, %s115
      %p124 = scmp.eq.s32.totalorder %s20, 0
      %p125 = por %p123, %p124
      %p126 = scmp.ne.s32.totalorder %s114, %s115
      %p127 = scmp.eq.s32.totalorder %s21, 1
      %p128 = por %p126, %p127
      %p130 = scmp.ne.s32.totalorder %s115, %s129
      %p131 = scmp.eq.s32.totalorder %s21, 0
      %p132 = por %p130, %p131
      %s134 = sadd.s32 %s133, 1
      %p137 = scmp.eq.s32.totalorder %s15, 1
      %p138 = scmp.ne.s32.totalorder %s133, %s135
      %p139 = scmp.eq.s32.totalorder %s15, 0
      %p140 = por %p138, %p139
      %p141 = scmp.ne.s32.totalorder %s133, %s135
      %p142 = scmp.eq.s32.totalorder %s20, 1
      %p143 = por %p141, %p142
      %p144 = scmp.ne.s32.totalorder %s135, %s136
      %p145 = scmp.eq.s32.totalorder %s20, 0
      %p146 = por %p144, %p145
      %p147 = scmp.ne.s32.totalorder %s135, %s136
      %p148 = scmp.eq.s32.totalorder %s21, 1
      %p149 = por %p147, %p148
      %p151 = scmp.ne.s32.totalorder %s136, %s150
      %p152 = scmp.eq.s32.totalorder %s21, 0
      %p153 = por %p151, %p152
      %s154 = ssub.s32 %s15, %s22
      %p155 = scmp.eq.s32.totalorder %s154, 0
      %s157 = sadd.s32 %s156, 1
      %s158 = scalar_select %p155, %s156, %s157
      %p161 = pneg %p155
      %p162 = scmp.eq.s32.totalorder %s15, 1
      %p163 = por %p161, %p162
      %p164 = scmp.ne.s32.totalorder %s156, %s159
      %p165 = scmp.eq.s32.totalorder %s15, 0
      %p166 = por %p164, %p165
      %p167 = scmp.ne.s32.totalorder %s156, %s159
      %p168 = scmp.eq.s32.totalorder %s20, 1
      %p169 = por %p167, %p168
      %p170 = scmp.ne.s32.totalorder %s159, %s160
      %p171 = scmp.eq.s32.totalorder %s20, 0
      %p172 = por %p170, %p171
      %p173 = scmp.ne.s32.totalorder %s159, %s160
      %p174 = scmp.eq.s32.totalorder %s21, 1
      %p175 = por %p173, %p174
      %p177 = scmp.ne.s32.totalorder %s160, %s176
      %p178 = scmp.eq.s32.totalorder %s21, 0
      %p179 = por %p177, %p178
      %p180 = scmp.le.s32.totalorder 1, %s15
      %p181 = scmp.lt.s32.totalorder %s15, 3
      %p182 = pnand %p180, %p181
      %p183 = pneg %p182
      // Predicated region
      $region9: #{tpu_custom_call.1} parent=5 // pred_check
        _
      $region10: #{tpu_custom_call.1} parent=5 // pred_check_branch
        %185 = sbr.rel (%p182) target = $region12
      $region11: #{tpu_custom_call.1} parent=5 // pred_region
        %s186 = ssub.s32 %s15, 1
        // Predicated region
        $region13: #{tpu_custom_call.1} parent=11 // pred_check
          %p187 = pneg %p62
        $region14: #{tpu_custom_call.1} parent=11 // pred_check_branch
          %189 = sbr.rel (%p187) target = $region16
        $region15: #{tpu_custom_call.1} parent=11 // pred_region
          _
        $region16: #{tpu_custom_call.1} parent=11 // pred_fallthru
          _
        // Predicated region
        $region17: #{tpu_custom_call.1} parent=11 // pred_check
          %p190 = pneg %p83
        $region18: #{tpu_custom_call.1} parent=11 // pred_check_branch
          %192 = sbr.rel (%p190) target = $region20
        $region19: #{tpu_custom_call.1} parent=11 // pred_region
          _
        $region20: #{tpu_custom_call.1} parent=11 // pred_fallthru
          _
        // Predicated region
        $region21: #{tpu_custom_call.1} parent=11 // pred_check
          %p193 = pneg %p104
        $region22: #{tpu_custom_call.1} parent=11 // pred_check_branch
          %195 = sbr.rel (%p193) target = $region24
        $region23: #{tpu_custom_call.1} parent=11 // pred_region
          _
        $region24: #{tpu_custom_call.1} parent=11 // pred_fallthru
          _
        // Predicated region
        $region25: #{tpu_custom_call.1} parent=11 // pred_check
          %p196 = pneg %p125
        $region26: #{tpu_custom_call.1} parent=11 // pred_check_branch
          %198 = sbr.rel (%p196) target = $region28
        $region27: #{tpu_custom_call.1} parent=11 // pred_region
          _
        $region28: #{tpu_custom_call.1} parent=11 // pred_fallthru
          _
        // Predicated region
        $region29: #{tpu_custom_call.1} parent=11 // pred_check
          %p199 = pneg %p146
        $region30: #{tpu_custom_call.1} parent=11 // pred_check_branch
          %201 = sbr.rel (%p199) target = $region32
        $region31: #{tpu_custom_call.1} parent=11 // pred_region
          _
        $region32: #{tpu_custom_call.1} parent=11 // pred_fallthru
          _
      $region12: #{tpu_custom_call.1} parent=5 // pred_fallthru
        _
      %p202 = scmp.lt.s32.totalorder %s15, 2
      // Predicated region
      $region33: #{tpu_custom_call.1} parent=5 // pred_check
        %p203 = pneg %p202
      $region34: #{tpu_custom_call.1} parent=5 // pred_check_branch
        %205 = sbr.rel (%p203) target = $region36
      $region35: #{tpu_custom_call.1} parent=5 // pred_region
        // Predicated region
        $region37: #{tpu_custom_call.1} parent=35 // pred_check
          %p206 = pneg %p35
        $region38: #{tpu_custom_call.1} parent=35 // pred_check_branch
          %208 = sbr.rel (%p206) target = $region40
        $region39: #{tpu_custom_call.1} parent=35 // pred_region
          %p209 = scmp.lt.s32.totalorder %s15, 1
          %s210 = scalar_select %p209, %s15, 1
          %s211 = smul.addr %s210, 2
          %s212 = smul.addr %s211, 2
          %s213 = scalar_lea.vmem %s0, %s212
        $region40: #{tpu_custom_call.1} parent=35 // pred_fallthru
          _
      $region36: #{tpu_custom_call.1} parent=5 // pred_fallthru
        _
      %p214 = scmp.le.s32.totalorder 1, %s15
      %p215 = scmp.lt.s32.totalorder %s15, 3
      %p216 = pnand %p214, %p215
      %p217 = pneg %p216
      // Predicated region
      $region41: #{tpu_custom_call.1} parent=5 // pred_check
        _
      $region42: #{tpu_custom_call.1} parent=5 // pred_check_branch
        %219 = sbr.rel (%p216) target = $region44
      $region43: #{tpu_custom_call.1} parent=5 // pred_region
        %s220 = ssub.s32 %s15, 1
        %p221 = scmp.lt.s32.totalorder %s20, 1
        %s222 = scalar_select %p221, %s20, 1
        %s223 = smul.addr %s222, 2
        %s224 = smul.addr %s223, 2
        %s225 = scalar_lea.vmem %s0, %s224
        %p226 = pneg %p41
        %p227 = pneg %p38
        %p228 = pneg %p62
        %p229 = pneg %p59
        %p230 = pneg %p83
        %p231 = pneg %p80
        %p232 = pneg %p104
        %p233 = pneg %p101
        %p234 = pneg %p125
        %p235 = pneg %p122
        %p236 = pneg %p146
        %p237 = pneg %p143
        %p238 = pneg %p172
        %p239 = pneg %p169
        %s240 = sand.u32 %s159, 1
        %s241 = scalar_lea.sflag [#allocation3], %s240
        %s242 = sand.u32 %s159, 1
        %s243 = smul.addr %s242, 64
        %s244 = scalar_lea.vmem [#allocation2], %s243
        %p245 = scmp.lt.s32.totalorder %s20, 1
        %s246 = scalar_select %p245, %s20, 1
        %s247 = smul.addr %s246, 2
        %s248 = smul.addr %s247, 2
        %s249 = scalar_lea.vmem %s0, %s248
        %v251 = vld [vmem:[%s249] sm:$0xf]
        %s252 = scalar_lea.vmem %s4, 64
        %v253 = vld [vmem:[%s252] sm:$0xf]
        %v254 = vld [vmem:[%s252 + $0x4] sm:$0xf]
        %v255 = vld [vmem:[%s252 + $0x8] sm:$0xf]
        %v256 = vld [vmem:[%s252 + $0xc] sm:$0xf]
        %v257 = vld [vmem:[%s1] sm:$0xf]
        %v258 = vld [vmem:[%s1 + $0x4] sm:$0xf]
        %v259 = vld [vmem:[%s1 + $0x8] sm:$0xf]
        %v260 = vld [vmem:[%s1 + $0xc] sm:$0xf]
        %v261 = vld [vmem:[%s1 + $0x10] sm:$0xf]
        %v262 = vld [vmem:[%s1 + $0x14] sm:$0xf]
        %v263 = vld [vmem:[%s1 + $0x18] sm:$0xf]
        %v264 = vld [vmem:[%s1 + $0x1c] sm:$0xf]
        %v265 = vld [vmem:[%s1 + $0x20] sm:$0xf]
        %v266 = vld [vmem:[%s1 + $0x24] sm:$0xf]
        %v267 = vld [vmem:[%s1 + $0x28] sm:$0xf]
        %v268 = vld [vmem:[%s1 + $0x2c] sm:$0xf]
        %v269 = vld [vmem:[%s1 + $0x30] sm:$0xf]
        %v270 = vld [vmem:[%s1 + $0x34] sm:$0xf]
        %v271 = vld [vmem:[%s1 + $0x38] sm:$0xf]
        %v272 = vld [vmem:[%s1 + $0x3c] sm:$0xf]
        %v273 = vld [vmem:[%s1 + $0x40] sm:$0xf]
        %v274 = vld [vmem:[%s1 + $0x44] sm:$0xf]
        %v275 = vld [vmem:[%s1 + $0x48] sm:$0xf]
        %v276 = vld [vmem:[%s1 + $0x4c] sm:$0xf]
        %v277 = vld [vmem:[%s1 + $0x50] sm:$0xf]
        %v278 = vld [vmem:[%s1 + $0x54] sm:$0xf]
        %v279 = vld [vmem:[%s1 + $0x58] sm:$0xf]
        %v280 = vld [vmem:[%s1 + $0x5c] sm:$0xf]
        %v281 = vld [vmem:[%s1 + $0x60] sm:$0xf]
        %v282 = vld [vmem:[%s1 + $0x64] sm:$0xf]
        %v283 = vld [vmem:[%s1 + $0x68] sm:$0xf]
        %v284 = vld [vmem:[%s1 + $0x6c] sm:$0xf]
        %v285 = vld [vmem:[%s1 + $0x70] sm:$0xf]
        %v286 = vld [vmem:[%s1 + $0x74] sm:$0xf]
        %v287 = vld [vmem:[%s1 + $0x78] sm:$0xf]
        %v288 = vld [vmem:[%s1 + $0x7c] sm:$0xf]
        %v291 = vunpack.c.l.s4 1983009808
        %v292 = vunpack.c.0.s8 %v291
        %v293 = vlaneseq
        %v294 = vshrl.u32 %v293, 7
        %v295 = vsub.s32 %v292, %v294
        %v296 = vrot.slane %v251, %v295
        %v297 = vcombine.high %v296, %v296
        %v332 = vunpack.c.l.b16 %v257
        %v333 = vunpack.c.l.b16 %v258
        %v334 = vunpack.c.l.b16 %v259
        %v335 = vunpack.c.l.b16 %v260
        %v336 = vunpack.c.l.b16 %v261
        %v337 = vunpack.c.l.b16 %v262
        %v338 = vunpack.c.l.b16 %v263
        %v339 = vunpack.c.l.b16 %v264
        %v340 = vunpack.c.l.b16 %v265
        %v341 = vunpack.c.l.b16 %v266
        %v342 = vunpack.c.l.b16 %v267
        %v343 = vunpack.c.l.b16 %v268
        %v344 = vunpack.c.l.b16 %v269
        %v345 = vunpack.c.l.b16 %v270
        %v346 = vunpack.c.l.b16 %v271
        %v347 = vunpack.c.l.b16 %v272
        %v348 = vunpack.c.l.b16 %v273
        %v349 = vunpack.c.l.b16 %v274
        %v350 = vunpack.c.l.b16 %v275
        %v351 = vunpack.c.l.b16 %v276
        %v352 = vunpack.c.l.b16 %v277
        %v353 = vunpack.c.l.b16 %v278
        %v354 = vunpack.c.l.b16 %v279
        %v355 = vunpack.c.l.b16 %v280
        %v356 = vunpack.c.l.b16 %v281
        %v357 = vunpack.c.l.b16 %v282
        %v358 = vunpack.c.l.b16 %v283
        %v359 = vunpack.c.l.b16 %v284
        %v360 = vunpack.c.l.b16 %v285
        %v361 = vunpack.c.l.b16 %v286
        %v362 = vunpack.c.l.b16 %v287
        %v363 = vunpack.c.l.b16 %v288
        %v364 = vpack.c.b16 %v333, %v332
        %v365 = vpack.c.b16 %v335, %v334
        %v366 = vpack.c.b16 %v337, %v336
        %v367 = vpack.c.b16 %v339, %v338
        %v368 = vpack.c.b16 %v341, %v340
        %v369 = vpack.c.b16 %v343, %v342
        %v370 = vpack.c.b16 %v345, %v344
        %v371 = vpack.c.b16 %v347, %v346
        %v372 = vpack.c.b16 %v349, %v348
        %v373 = vpack.c.b16 %v351, %v350
        %v374 = vpack.c.b16 %v353, %v352
        %v375 = vpack.c.b16 %v355, %v354
        %v376 = vpack.c.b16 %v357, %v356
        %v377 = vpack.c.b16 %v359, %v358
        %v378 = vpack.c.b16 %v361, %v360
        %v379 = vpack.c.b16 %v363, %v362
        %396 = vmatprep.subr.bf16.mxu0 0
        %397 = vmatpush1.bf16.msra.mxu0 %v364
        %398 = vmatprep.subr.bf16.mxu0 0
        %399 = vmatpush1.bf16.msra.mxu0 %v365
        %400 = vmatprep.subr.bf16.mxu0 0
        %401 = vmatpush1.bf16.msra.mxu0 %v366
        %402 = vmatprep.subr.bf16.mxu0 0
        %403 = vmatpush1.bf16.msra.mxu0 %v367
        %404 = vmatprep.subr.bf16.mxu0 0
        %405 = vmatpush1.bf16.msra.mxu0 %v368
        %406 = vmatprep.subr.bf16.mxu0 0
        %407 = vmatpush1.bf16.msra.mxu0 %v369
        %408 = vmatprep.subr.bf16.mxu0 0
        %409 = vmatpush1.bf16.msra.mxu0 %v370
        %410 = vmatprep.subr.bf16.mxu0 0
        %411 = vmatpush1.bf16.msra.mxu0 %v371
        %412 = vmatprep.subr.bf16.mxu0 0
        %413 = vmatpush1.bf16.msra.mxu0 %v372
        %414 = vmatprep.subr.bf16.mxu0 0
        %415 = vmatpush1.bf16.msra.mxu0 %v373
        %416 = vmatprep.subr.bf16.mxu0 0
        %417 = vmatpush1.bf16.msra.mxu0 %v374
        %418 = vmatprep.subr.bf16.mxu0 0
        %419 = vmatpush1.bf16.msra.mxu0 %v375
        %420 = vmatprep.subr.bf16.mxu0 0
        %421 = vmatpush1.bf16.msra.mxu0 %v376
        %422 = vmatprep.subr.bf16.mxu0 0
        %423 = vmatpush1.bf16.msra.mxu0 %v377
        %424 = vmatprep.subr.bf16.mxu0 0
        %425 = vmatpush1.bf16.msra.mxu0 %v378
        %426 = vmatprep.subr.bf16.mxu0 0
        %427 = vmatpush1.bf16.msra.mxu0 %v379
        %428 = vmatprep.mubr.bf16.mxu0 %v297
        %429 = vmatmul.mubr.bf16.gmra.mrb[0].mxu0 %v296
        %v430 = vpop.f32.mrb[0].mxu0
        %v431 = vadd.f32 0.0, %v430
        %v432 = vpop.f32.mrb[0].mxu0
        %v433 = vpop.f32.mrb[0].mxu0
        %v434 = vpop.f32.mrb[0].mxu0
        %435 = vdwg.mxu0
        %v436 = vld [vmem:[%s3] sm:$0x3]
        %v437 = vpack.c.bf16 %v431, %v431
        %vm438 = vcmask 31744
        %v440 = vsel %vm438, %v436, 0
        %vm442 = vcmask 1041408
        %v444 = vsel %vm442, %v437, 0
        %446 = vmatprep.subr.bf16.mxu0 0
        %447 = vmatpush1.bf16.msra.mxu0 %v444
        %448 = vmatprep.subr.bf16.mxu0 0
        %449 = vmatpush1.bf16.msra.mxu0 0
        %450 = vmatprep.subr.bf16.mxu0 0
        %451 = vmatpush1.bf16.msra.mxu0 0
        %452 = vmatprep.subr.bf16.mxu0 0
        %453 = vmatpush1.bf16.msra.mxu0 0
        %454 = vmatprep.subr.bf16.mxu0 0
        %455 = vmatpush1.bf16.msra.mxu0 0
        %456 = vmatprep.subr.bf16.mxu0 0
        %457 = vmatpush1.bf16.msra.mxu0 0
        %458 = vmatprep.subr.bf16.mxu0 0
        %459 = vmatpush1.bf16.msra.mxu0 0
        %460 = vmatprep.subr.bf16.mxu0 0
        %461 = vmatpush1.bf16.msra.mxu0 0
        %462 = vmatprep.subr.bf16.mxu0 0
        %463 = vmatpush1.bf16.msra.mxu0 0
        %464 = vmatprep.subr.bf16.mxu0 0
        %465 = vmatpush1.bf16.msra.mxu0 0
        %466 = vmatprep.subr.bf16.mxu0 0
        %467 = vmatpush1.bf16.msra.mxu0 0
        %468 = vmatprep.subr.bf16.mxu0 0
        %469 = vmatpush1.bf16.msra.mxu0 0
        %470 = vmatprep.subr.bf16.mxu0 0
        %471 = vmatpush1.bf16.msra.mxu0 0
        %472 = vmatprep.subr.bf16.mxu0 0
        %473 = vmatpush1.bf16.msra.mxu0 0
        %474 = vmatprep.subr.bf16.mxu0 0
        %475 = vmatpush1.bf16.msra.mxu0 0
        %476 = vmatprep.subr.bf16.mxu0 0
        %477 = vmatpush1.bf16.msra.mxu0 0
        %478 = vmatprep.mubr.bf16.mxu0 0
        %479 = vmatmul.mubr.bf16.gmra.mrb[0].mxu0 %v440
        %v480 = vpop.f32.mrb[0].mxu0
        %v481 = vadd.f32 0.0, %v480
        %v482 = vpop.f32.mrb[0].mxu0
        %v483 = vpop.f32.mrb[0].mxu0
        %v484 = vpop.f32.mrb[0].mxu0
        %485 = vdwg.mxu0
        %v486 = vpack.c.bf16 %v481, %v481
        %v487 = vld [vmem:[%s2] sm:$0xff]
        %v488 = vld [vmem:[%s2 + $0x8] sm:$0xff]
        %v489 = vld [vmem:[%s2 + $0x10] sm:$0xff]
        %v490 = vld [vmem:[%s2 + $0x18] sm:$0xff]
        %v491 = vld [vmem:[%s2 + $0x20] sm:$0x33]
        %v497 = vunpack.c.l.b16 %v487
        %v498 = vunpack.c.h.b16 %v487
        %v499 = vunpack.c.l.b16 %v488
        %v500 = vunpack.c.h.b16 %v488
        %v501 = vunpack.c.l.b16 %v489
        %v502 = vunpack.c.h.b16 %v489
        %v503 = vunpack.c.l.b16 %v490
        %v504 = vunpack.c.h.b16 %v490
        %v505 = vunpack.c.l.b16 %v491
        %v506 = vunpack.c.h.b16 %v491
        %v507 = vpack.c.b16 %v499, %v497
        %v508 = vpack.c.b16 %v500, %v498
        %v509 = vpack.c.b16 %v503, %v501
        %v510 = vpack.c.b16 %v504, %v502
        %v511 = vpack.c.b16 %v505, %v505
        %v512 = vpack.c.b16 %v506, %v506
        %vm517 = vcmask 293888
        %v519 = vsel %vm517, %v486, 0
        %v522 = vsel %vm442, %v511, 0
        %v525 = vsel %vm442, %v512, 0
        %527 = vmatprep.subr.bf16.mxu0 %v508
        %528 = vmatpush1.bf16.msra.mxu0 %v507
        %529 = vmatprep.subr.bf16.mxu0 %v510
        %530 = vmatpush1.bf16.msra.mxu0 %v509
        %531 = vmatprep.subr.bf16.mxu0 %v525
        %532 = vmatpush1.bf16.msra.mxu0 %v522
        %533 = vmatprep.subr.bf16.mxu0 0
        %534 = vmatpush1.bf16.msra.mxu0 0
        %535 = vmatprep.subr.bf16.mxu0 0
        %536 = vmatpush1.bf16.msra.mxu0 0
        %537 = vmatprep.subr.bf16.mxu0 0
        %538 = vmatpush1.bf16.msra.mxu0 0
        %539 = vmatprep.subr.bf16.mxu0 0
        %540 = vmatpush1.bf16.msra.mxu0 0
        %541 = vmatprep.subr.bf16.mxu0 0
        %542 = vmatpush1.bf16.msra.mxu0 0
        %543 = vmatprep.subr.bf16.mxu0 0
        %544 = vmatpush1.bf16.msra.mxu0 0
        %545 = vmatprep.subr.bf16.mxu0 0
        %546 = vmatpush1.bf16.msra.mxu0 0
        %547 = vmatprep.subr.bf16.mxu0 0
        %548 = vmatpush1.bf16.msra.mxu0 0
        %549 = vmatprep.subr.bf16.mxu0 0
        %550 = vmatpush1.bf16.msra.mxu0 0
        %551 = vmatprep.subr.bf16.mxu0 0
        %552 = vmatpush1.bf16.msra.mxu0 0
        %553 = vmatprep.subr.bf16.mxu0 0
        %554 = vmatpush1.bf16.msra.mxu0 0
        %555 = vmatprep.subr.bf16.mxu0 0
        %556 = vmatpush1.bf16.msra.mxu0 0
        %557 = vmatprep.subr.bf16.mxu0 0
        %558 = vmatpush1.bf16.msra.mxu0 0
        %559 = vmatprep.mubr.bf16.mxu0 0
        %560 = vmatmul.mubr.bf16.gmra.mrb[0].mxu0 %v519
        %v561 = vpop.f32.mrb[0].mxu0
        %v562 = vadd.f32 0.0, %v561
        %v563 = vpop.f32.mrb[0].mxu0
        %v564 = vadd.f32 0.0, %v563
        %v565 = vpop.f32.mrb[0].mxu0
        %v566 = vpop.f32.mrb[0].mxu0
        %567 = vdwg.mxu0
        %v568 = vld [vmem:[%s4] sm:$0xf]
        %v569 = vld [vmem:[%s4 + $0x4] sm:$0xf]
        %v570 = vld [vmem:[%s4 + $0x8] sm:$0xf]
        %v571 = vld [vmem:[%s4 + $0xc] sm:$0xf]
        %v572 = vpack.c.bf16 %v562, %v562
        %v573 = vpack.c.bf16 %v564, %v564
        %v578 = vunpack.c.l.b16 %v568
        %v579 = vunpack.c.l.b16 %v569
        %v580 = vunpack.c.l.b16 %v570
        %v581 = vunpack.c.l.b16 %v571
        %v582 = vpack.c.b16 %v579, %v578
        %v583 = vpack.c.b16 %v581, %v580
        %v585 = vsel %vm438, %v582, 0
        %v588 = vsel %vm438, %v583, 0
        %v591 = vsel %vm442, %v572, 0
        %v594 = vsel %vm442, %v573, 0
        %596 = vmatprep.subr.bf16.mxu0 %v594
        %597 = vmatpush1.bf16.msra.mxu0 %v591
        %598 = vmatprep.subr.bf16.mxu0 0
        %599 = vmatpush1.bf16.msra.mxu0 0
        %600 = vmatprep.subr.bf16.mxu0 0
        %601 = vmatpush1.bf16.msra.mxu0 0
        %602 = vmatprep.subr.bf16.mxu0 0
        %603 = vmatpush1.bf16.msra.mxu0 0
        %604 = vmatprep.subr.bf16.mxu0 0
        %605 = vmatpush1.bf16.msra.mxu0 0
        %606 = vmatprep.subr.bf16.mxu0 0
        %607 = vmatpush1.bf16.msra.mxu0 0
        %608 = vmatprep.subr.bf16.mxu0 0
        %609 = vmatpush1.bf16.msra.mxu0 0
        %610 = vmatprep.subr.bf16.mxu0 0
        %611 = vmatpush1.bf16.msra.mxu0 0
        %612 = vmatprep.subr.bf16.mxu0 0
        %613 = vmatpush1.bf16.msra.mxu0 0
        %614 = vmatprep.subr.bf16.mxu0 0
        %615 = vmatpush1.bf16.msra.mxu0 0
        %616 = vmatprep.subr.bf16.mxu0 0
        %617 = vmatpush1.bf16.msra.mxu0 0
        %618 = vmatprep.subr.bf16.mxu0 0
        %619 = vmatpush1.bf16.msra.mxu0 0
        %620 = vmatprep.subr.bf16.mxu0 0
        %621 = vmatpush1.bf16.msra.mxu0 0
        %622 = vmatprep.subr.bf16.mxu0 0
        %623 = vmatpush1.bf16.msra.mxu0 0
        %624 = vmatprep.subr.bf16.mxu0 0
        %625 = vmatpush1.bf16.msra.mxu0 0
        %626 = vmatprep.subr.bf16.mxu0 0
        %627 = vmatpush1.bf16.msra.mxu0 0
        %628 = vmatprep.mubr.bf16.mxu0 0
        %629 = vmatmul.mubr.bf16.gmra.mrb[0].mxu0 %v585
        %v630 = vpop.f32.mrb[0].mxu0
        %v631 = vadd.f32 0.0, %v630
        %v632 = vpop.f32.mrb[0].mxu0
        %v633 = vadd.f32 0.0, %v632
        %v634 = vpop.f32.mrb[0].mxu0
        %v635 = vadd.f32 0.0, %v634
        %v636 = vpop.f32.mrb[0].mxu0
        %v637 = vadd.f32 0.0, %v636
        %638 = vmatprep.mubr.bf16.mxu0 0
        %639 = vmatmul.mubr.bf16.gmra.mrb[0].mxu0 %v588
        %v640 = vpop.f32.mrb[0].mxu0
        %v641 = vadd.f32 0.0, %v640
        %v642 = vpop.f32.mrb[0].mxu0
        %v643 = vadd.f32 0.0, %v642
        %v644 = vpop.f32.mrb[0].mxu0
        %v645 = vadd.f32 0.0, %v644
        %v646 = vpop.f32.mrb[0].mxu0
        %v647 = vadd.f32 0.0, %v646
        %648 = vdwg.mxu0
        %v653 = vunpack.c.l.b16 %v253
        %v654 = vunpack.c.l.b16 %v254
        %v655 = vunpack.c.l.b16 %v255
        %v656 = vunpack.c.l.b16 %v256
        %v657 = vpack.c.b16 %v654, %v653
        %v658 = vpack.c.b16 %v656, %v655
        %v660 = vsel %vm438, %v657, 0
        %v663 = vsel %vm438, %v658, 0
        %v666 = vsel %vm442, %v296, 0
        %v669 = vsel %vm442, %v297, 0
        %671 = vmatprep.subr.bf16.mxu0 %v669
        %672 = vmatpush1.bf16.msra.mxu0 %v666
        %673 = vmatprep.subr.bf16.mxu0 0
        %674 = vmatpush1.bf16.msra.mxu0 0
        %675 = vmatprep.subr.bf16.mxu0 0
        %676 = vmatpush1.bf16.msra.mxu0 0
        %677 = vmatprep.subr.bf16.mxu0 0
        %678 = vmatpush1.bf16.msra.mxu0 0
        %679 = vmatprep.subr.bf16.mxu0 0
        %680 = vmatpush1.bf16.msra.mxu0 0
        %681 = vmatprep.subr.bf16.mxu0 0
        %682 = vmatpush1.bf16.msra.mxu0 0
        %683 = vmatprep.subr.bf16.mxu0 0
        %684 = vmatpush1.bf16.msra.mxu0 0
        %685 = vmatprep.subr.bf16.mxu0 0
        %686 = vmatpush1.bf16.msra.mxu0 0
        %687 = vmatprep.subr.bf16.mxu0 0
        %688 = vmatpush1.bf16.msra.mxu0 0
        %689 = vmatprep.subr.bf16.mxu0 0
        %690 = vmatpush1.bf16.msra.mxu0 0
        %691 = vmatprep.subr.bf16.mxu0 0
        %692 = vmatpush1.bf16.msra.mxu0 0
        %693 = vmatprep.subr.bf16.mxu0 0
        %694 = vmatpush1.bf16.msra.mxu0 0
        %695 = vmatprep.subr.bf16.mxu0 0
        %696 = vmatpush1.bf16.msra.mxu0 0
        %697 = vmatprep.subr.bf16.mxu0 0
        %698 = vmatpush1.bf16.msra.mxu0 0
        %699 = vmatprep.subr.bf16.mxu0 0
        %700 = vmatpush1.bf16.msra.mxu0 0
        %701 = vmatprep.subr.bf16.mxu0 0
        %702 = vmatpush1.bf16.msra.mxu0 0
        %703 = vmatprep.mubr.bf16.mxu0 0
        %704 = vmatmul.mubr.bf16.gmra.mrb[0].mxu0 %v660
        %v705 = vpop.f32.mrb[0].mxu0
        %v706 = vadd.f32 %v631, %v705
        %v707 = vpop.f32.mrb[0].mxu0
        %v708 = vadd.f32 %v633, %v707
        %v709 = vpop.f32.mrb[0].mxu0
        %v710 = vadd.f32 %v635, %v709
        %v711 = vpop.f32.mrb[0].mxu0
        %v712 = vadd.f32 %v637, %v711
        %713 = vmatprep.mubr.bf16.mxu0 0
        %714 = vmatmul.mubr.bf16.gmra.mrb[0].mxu0 %v663
        %v715 = vpop.f32.mrb[0].mxu0
        %v716 = vadd.f32 %v641, %v715
        %v717 = vpop.f32.mrb[0].mxu0
        %v718 = vadd.f32 %v643, %v717
        %v719 = vpop.f32.mrb[0].mxu0
        %v720 = vadd.f32 %v645, %v719
        %v721 = vpop.f32.mrb[0].mxu0
        %v722 = vadd.f32 %v647, %v721
        %723 = vdwg.mxu0
        %s724 = scalar_lea.vmem %s1, 128
        %v725 = vld [vmem:[%s724] sm:$0xf]
        %v726 = vld [vmem:[%s724 + $0x4] sm:$0xf]
        %v727 = vld [vmem:[%s724 + $0x8] sm:$0xf]
        %v728 = vld [vmem:[%s724 + $0xc] sm:$0xf]
        %v729 = vld [vmem:[%s724 + $0x10] sm:$0xf]
        %v730 = vld [vmem:[%s724 + $0x14] sm:$0xf]
        %v731 = vld [vmem:[%s724 + $0x18] sm:$0xf]
        %v732 = vld [vmem:[%s724 + $0x1c] sm:$0xf]
        %v733 = vld [vmem:[%s724 + $0x20] sm:$0xf]
        %v734 = vld [vmem:[%s724 + $0x24] sm:$0xf]
        %v735 = vld [vmem:[%s724 + $0x28] sm:$0xf]
        %v736 = vld [vmem:[%s724 + $0x2c] sm:$0xf]
        %v737 = vld [vmem:[%s724 + $0x30] sm:$0xf]
        %v738 = vld [vmem:[%s724 + $0x34] sm:$0xf]
        %v739 = vld [vmem:[%s724 + $0x38] sm:$0xf]
        %v740 = vld [vmem:[%s724 + $0x3c] sm:$0xf]
        %v741 = vld [vmem:[%s724 + $0x40] sm:$0xf]
        %v742 = vld [vmem:[%s724 + $0x44] sm:$0xf]
        %v743 = vld [vmem:[%s724 + $0x48] sm:$0xf]
        %v744 = vld [vmem:[%s724 + $0x4c] sm:$0xf]
        %v745 = vld [vmem:[%s724 + $0x50] sm:$0xf]
        %v746 = vld [vmem:[%s724 + $0x54] sm:$0xf]
        %v747 = vld [vmem:[%s724 + $0x58] sm:$0xf]
        %v748 = vld [vmem:[%s724 + $0x5c] sm:$0xf]
        %v749 = vld [vmem:[%s724 + $0x60] sm:$0xf]
        %v750 = vld [vmem:[%s724 + $0x64] sm:$0xf]
        %v751 = vld [vmem:[%s724 + $0x68] sm:$0xf]
        %v752 = vld [vmem:[%s724 + $0x6c] sm:$0xf]
        %v753 = vld [vmem:[%s724 + $0x70] sm:$0xf]
        %v754 = vld [vmem:[%s724 + $0x74] sm:$0xf]
        %v755 = vld [vmem:[%s724 + $0x78] sm:$0xf]
        %v756 = vld [vmem:[%s724 + $0x7c] sm:$0xf]
        %v789 = vunpack.c.l.b16 %v725
        %v790 = vunpack.c.l.b16 %v726
        %v791 = vunpack.c.l.b16 %v727
        %v792 = vunpack.c.l.b16 %v728
        %v793 = vunpack.c.l.b16 %v729
        %v794 = vunpack.c.l.b16 %v730
        %v795 = vunpack.c.l.b16 %v731
        %v796 = vunpack.c.l.b16 %v732
        %v797 = vunpack.c.l.b16 %v733
        %v798 = vunpack.c.l.b16 %v734
        %v799 = vunpack.c.l.b16 %v735
        %v800 = vunpack.c.l.b16 %v736
        %v801 = vunpack.c.l.b16 %v737
        %v802 = vunpack.c.l.b16 %v738
        %v803 = vunpack.c.l.b16 %v739
        %v804 = vunpack.c.l.b16 %v740
        %v805 = vunpack.c.l.b16 %v741
        %v806 = vunpack.c.l.b16 %v742
        %v807 = vunpack.c.l.b16 %v743
        %v808 = vunpack.c.l.b16 %v744
        %v809 = vunpack.c.l.b16 %v745
        %v810 = vunpack.c.l.b16 %v746
        %v811 = vunpack.c.l.b16 %v747
        %v812 = vunpack.c.l.b16 %v748
        %v813 = vunpack.c.l.b16 %v749
        %v814 = vunpack.c.l.b16 %v750
        %v815 = vunpack.c.l.b16 %v751
        %v816 = vunpack.c.l.b16 %v752
        %v817 = vunpack.c.l.b16 %v753
        %v818 = vunpack.c.l.b16 %v754
        %v819 = vunpack.c.l.b16 %v755
        %v820 = vunpack.c.l.b16 %v756
        %v821 = vpack.c.b16 %v790, %v789
        %v822 = vpack.c.b16 %v792, %v791
        %v823 = vpack.c.b16 %v794, %v793
        %v824 = vpack.c.b16 %v796, %v795
        %v825 = vpack.c.b16 %v798, %v797
        %v826 = vpack.c.b16 %v800, %v799
        %v827 = vpack.c.b16 %v802, %v801
        %v828 = vpack.c.b16 %v804, %v803
        %v829 = vpack.c.b16 %v806, %v805
        %v830 = vpack.c.b16 %v808, %v807
        %v831 = vpack.c.b16 %v810, %v809
        %v832 = vpack.c.b16 %v812, %v811
        %v833 = vpack.c.b16 %v814, %v813
        %v834 = vpack.c.b16 %v816, %v815
        %v835 = vpack.c.b16 %v818, %v817
        %v836 = vpack.c.b16 %v820, %v819
        %853 = vmatprep.subr.bf16.mxu0 0
        %854 = vmatpush1.bf16.msra.mxu0 %v821
        %855 = vmatprep.subr.bf16.mxu0 0
        %856 = vmatpush1.bf16.msra.mxu0 %v822
        %857 = vmatprep.subr.bf16.mxu0 0
        %858 = vmatpush1.bf16.msra.mxu0 %v823
        %859 = vmatprep.subr.bf16.mxu0 0
        %860 = vmatpush1.bf16.msra.mxu0 %v824
        %861 = vmatprep.subr.bf16.mxu0 0
        %862 = vmatpush1.bf16.msra.mxu0 %v825
        %863 = vmatprep.subr.bf16.mxu0 0
        %864 = vmatpush1.bf16.msra.mxu0 %v826
        %865 = vmatprep.subr.bf16.mxu0 0
        %866 = vmatpush1.bf16.msra.mxu0 %v827
        %867 = vmatprep.subr.bf16.mxu0 0
        %868 = vmatpush1.bf16.msra.mxu0 %v828
        %869 = vmatprep.subr.bf16.mxu0 0
        %870 = vmatpush1.bf16.msra.mxu0 %v829
        %871 = vmatprep.subr.bf16.mxu0 0
        %872 = vmatpush1.bf16.msra.mxu0 %v830
        %873 = vmatprep.subr.bf16.mxu0 0
        %874 = vmatpush1.bf16.msra.mxu0 %v831
        %875 = vmatprep.subr.bf16.mxu0 0
        %876 = vmatpush1.bf16.msra.mxu0 %v832
        %877 = vmatprep.subr.bf16.mxu0 0
        %878 = vmatpush1.bf16.msra.mxu0 %v833
        %879 = vmatprep.subr.bf16.mxu0 0
        %880 = vmatpush1.bf16.msra.mxu0 %v834
        %881 = vmatprep.subr.bf16.mxu0 0
        %882 = vmatpush1.bf16.msra.mxu0 %v835
        %883 = vmatprep.subr.bf16.mxu0 0
        %884 = vmatpush1.bf16.msra.mxu0 %v836
        %885 = vmatprep.mubr.bf16.mxu0 %v297
        %886 = vmatmul.mubr.bf16.gmra.mrb[0].mxu0 %v296
        %v887 = vpop.f32.mrb[0].mxu0
        %v888 = vadd.f32 0.0, %v887
        %v889 = vpop.f32.mrb[0].mxu0
        %v890 = vpop.f32.mrb[0].mxu0
        %v891 = vpop.f32.mrb[0].mxu0
        %892 = vdwg.mxu0
        %s893 = scalar_lea.vmem %s3, 2
        %v894 = vld [vmem:[%s893] sm:$0x3]
        %v895 = vpack.c.bf16 %v888, %v888
        %v897 = vsel %vm438, %v894, 0
        %v900 = vsel %vm442, %v895, 0
        %902 = vmatprep.subr.bf16.mxu0 0
        %903 = vmatpush1.bf16.msra.mxu0 %v900
        %904 = vmatprep.subr.bf16.mxu0 0
        %905 = vmatpush1.bf16.msra.mxu0 0
        %906 = vmatprep.subr.bf16.mxu0 0
        %907 = vmatpush1.bf16.msra.mxu0 0
        %908 = vmatprep.subr.bf16.mxu0 0
        %909 = vmatpush1.bf16.msra.mxu0 0
        %910 = vmatprep.subr.bf16.mxu0 0
        %911 = vmatpush1.bf16.msra.mxu0 0
        %912 = vmatprep.subr.bf16.mxu0 0
        %913 = vmatpush1.bf16.msra.mxu0 0
        %914 = vmatprep.subr.bf16.mxu0 0
        %915 = vmatpush1.bf16.msra.mxu0 0
        %916 = vmatprep.subr.bf16.mxu0 0
        %917 = vmatpush1.bf16.msra.mxu0 0
        %918 = vmatprep.subr.bf16.mxu0 0
        %919 = vmatpush1.bf16.msra.mxu0 0
        %920 = vmatprep.subr.bf16.mxu0 0
        %921 = vmatpush1.bf16.msra.mxu0 0
        %922 = vmatprep.subr.bf16.mxu0 0
        %923 = vmatpush1.bf16.msra.mxu0 0
        %924 = vmatprep.subr.bf16.mxu0 0
        %925 = vmatpush1.bf16.msra.mxu0 0
        %926 = vmatprep.subr.bf16.mxu0 0
        %927 = vmatpush1.bf16.msra.mxu0 0
        %928 = vmatprep.subr.bf16.mxu0 0
        %929 = vmatpush1.bf16.msra.mxu0 0
        %930 = vmatprep.subr.bf16.mxu0 0
        %931 = vmatpush1.bf16.msra.mxu0 0
        %932 = vmatprep.subr.bf16.mxu0 0
        %933 = vmatpush1.bf16.msra.mxu0 0
        %934 = vmatprep.mubr.bf16.mxu0 0
        %935 = vmatmul.mubr.bf16.gmra.mrb[0].mxu0 %v897
        %v936 = vpop.f32.mrb[0].mxu0
        %v937 = vadd.f32 0.0, %v936
        %v938 = vpop.f32.mrb[0].mxu0
        %v939 = vpop.f32.mrb[0].mxu0
        %v940 = vpop.f32.mrb[0].mxu0
        %941 = vdwg.mxu0
        %v942 = vpack.c.bf16 %v937, %v937
        %s943 = scalar_lea.vmem %s2, 40
        %v944 = vld [vmem:[%s943] sm:$0xff]
        %v945 = vld [vmem:[%s943 + $0x8] sm:$0xff]
        %v946 = vld [vmem:[%s943 + $0x10] sm:$0xff]
        %v947 = vld [vmem:[%s943 + $0x18] sm:$0xff]
        %v948 = vld [vmem:[%s943 + $0x20] sm:$0x33]
        %v954 = vunpack.c.l.b16 %v944
        %v955 = vunpack.c.h.b16 %v944
        %v956 = vunpack.c.l.b16 %v945
        %v957 = vunpack.c.h.b16 %v945
        %v958 = vunpack.c.l.b16 %v946
        %v959 = vunpack.c.h.b16 %v946
        %v960 = vunpack.c.l.b16 %v947
        %v961 = vunpack.c.h.b16 %v947
        %v962 = vunpack.c.l.b16 %v948
        %v963 = vunpack.c.h.b16 %v948
        %v964 = vpack.c.b16 %v956, %v954
        %v965 = vpack.c.b16 %v957, %v955
        %v966 = vpack.c.b16 %v960, %v958
        %v967 = vpack.c.b16 %v961, %v959
        %v968 = vpack.c.b16 %v962, %v962
        %v969 = vpack.c.b16 %v963, %v963
        %v975 = vsel %vm517, %v942, 0
        %v978 = vsel %vm442, %v968, 0
        %v981 = vsel %vm442, %v969, 0
        %983 = vmatprep.subr.bf16.mxu0 %v965
        %984 = vmatpush1.bf16.msra.mxu0 %v964
        %985 = vmatprep.subr.bf16.mxu0 %v967
        %986 = vmatpush1.bf16.msra.mxu0 %v966
        %987 = vmatprep.subr.bf16.mxu0 %v981
        %988 = vmatpush1.bf16.msra.mxu0 %v978
        %989 = vmatprep.subr.bf16.mxu0 0
        %990 = vmatpush1.bf16.msra.mxu0 0
        %991 = vmatprep.subr.bf16.mxu0 0
        %992 = vmatpush1.bf16.msra.mxu0 0
        %993 = vmatprep.subr.bf16.mxu0 0
        %994 = vmatpush1.bf16.msra.mxu0 0
        %995 = vmatprep.subr.bf16.mxu0 0
        %996 = vmatpush1.bf16.msra.mxu0 0
        %997 = vmatprep.subr.bf16.mxu0 0
        %998 = vmatpush1.bf16.msra.mxu0 0
        %999 = vmatprep.subr.bf16.mxu0 0
        %1000 = vmatpush1.bf16.msra.mxu0 0
        %1001 = vmatprep.subr.bf16.mxu0 0
        %1002 = vmatpush1.bf16.msra.mxu0 0
        %1003 = vmatprep.subr.bf16.mxu0 0
        %1004 = vmatpush1.bf16.msra.mxu0 0
        %1005 = vmatprep.subr.bf16.mxu0 0
        %1006 = vmatpush1.bf16.msra.mxu0 0
        %1007 = vmatprep.subr.bf16.mxu0 0
        %1008 = vmatpush1.bf16.msra.mxu0 0
        %1009 = vmatprep.subr.bf16.mxu0 0
        %1010 = vmatpush1.bf16.msra.mxu0 0
        %1011 = vmatprep.subr.bf16.mxu0 0
        %1012 = vmatpush1.bf16.msra.mxu0 0
        %1013 = vmatprep.subr.bf16.mxu0 0
        %1014 = vmatpush1.bf16.msra.mxu0 0
        %1015 = vmatprep.mubr.bf16.mxu0 0
        %1016 = vmatmul.mubr.bf16.gmra.mrb[0].mxu0 %v975
        %v1017 = vpop.f32.mrb[0].mxu0
        %v1018 = vadd.f32 0.0, %v1017
        %v1019 = vpop.f32.mrb[0].mxu0
        %v1020 = vadd.f32 0.0, %v1019
        %v1021 = vpop.f32.mrb[0].mxu0
        %v1022 = vpop.f32.mrb[0].mxu0
        %1023 = vdwg.mxu0
        %s1024 = scalar_lea.vmem %s4, 16
        %v1025 = vld [vmem:[%s1024] sm:$0xf]
        %v1026 = vld [vmem:[%s1024 + $0x4] sm:$0xf]
        %v1027 = vld [vmem:[%s1024 + $0x8] sm:$0xf]
        %v1028 = vld [vmem:[%s1024 + $0xc] sm:$0xf]
        %v1029 = vpack.c.bf16 %v1018, %v1018
        %v1030 = vpack.c.bf16 %v1020, %v1020
        %v1035 = vunpack.c.l.b16 %v1025
        %v1036 = vunpack.c.l.b16 %v1026
        %v1037 = vunpack.c.l.b16 %v1027
        %v1038 = vunpack.c.l.b16 %v1028
        %v1039 = vpack.c.b16 %v1036, %v1035
        %v1040 = vpack.c.b16 %v1038, %v1037
        %v1042 = vsel %vm438, %v1039, 0
        %v1045 = vsel %vm438, %v1040, 0
        %v1048 = vsel %vm442, %v1029, 0
        %v1051 = vsel %vm442, %v1030, 0
        %1053 = vmatprep.subr.bf16.mxu0 %v1051
        %1054 = vmatpush1.bf16.msra.mxu0 %v1048
        %1055 = vmatprep.subr.bf16.mxu0 0
        %1056 = vmatpush1.bf16.msra.mxu0 0
        %1057 = vmatprep.subr.bf16.mxu0 0
        %1058 = vmatpush1.bf16.msra.mxu0 0
        %1059 = vmatprep.subr.bf16.mxu0 0
        %1060 = vmatpush1.bf16.msra.mxu0 0
        %1061 = vmatprep.subr.bf16.mxu0 0
        %1062 = vmatpush1.bf16.msra.mxu0 0
        %1063 = vmatprep.subr.bf16.mxu0 0
        %1064 = vmatpush1.bf16.msra.mxu0 0
        %1065 = vmatprep.subr.bf16.mxu0 0
        %1066 = vmatpush1.bf16.msra.mxu0 0
        %1067 = vmatprep.subr.bf16.mxu0 0
        %1068 = vmatpush1.bf16.msra.mxu0 0
        %1069 = vmatprep.subr.bf16.mxu0 0
        %1070 = vmatpush1.bf16.msra.mxu0 0
        %1071 = vmatprep.subr.bf16.mxu0 0
        %1072 = vmatpush1.bf16.msra.mxu0 0
        %1073 = vmatprep.subr.bf16.mxu0 0
        %1074 = vmatpush1.bf16.msra.mxu0 0
        %1075 = vmatprep.subr.bf16.mxu0 0
        %1076 = vmatpush1.bf16.msra.mxu0 0
        %1077 = vmatprep.subr.bf16.mxu0 0
        %1078 = vmatpush1.bf16.msra.mxu0 0
        %1079 = vmatprep.subr.bf16.mxu0 0
        %1080 = vmatpush1.bf16.msra.mxu0 0
        %1081 = vmatprep.subr.bf16.mxu0 0
        %1082 = vmatpush1.bf16.msra.mxu0 0
        %1083 = vmatprep.subr.bf16.mxu0 0
        %1084 = vmatpush1.bf16.msra.mxu0 0
        %1085 = vmatprep.mubr.bf16.mxu0 0
        %1086 = vmatmul.mubr.bf16.gmra.mrb[0].mxu0 %v1042
        %v1087 = vpop.f32.mrb[0].mxu0
        %v1088 = vadd.f32 0.0, %v1087
        %v1089 = vpop.f32.mrb[0].mxu0
        %v1090 = vadd.f32 0.0, %v1089
        %v1091 = vpop.f32.mrb[0].mxu0
        %v1092 = vadd.f32 0.0, %v1091
        %v1093 = vpop.f32.mrb[0].mxu0
        %v1094 = vadd.f32 0.0, %v1093
        %1095 = vmatprep.mubr.bf16.mxu0 0
        %1096 = vmatmul.mubr.bf16.gmra.mrb[0].mxu0 %v1045
        %v1097 = vpop.f32.mrb[0].mxu0
        %v1098 = vadd.f32 0.0, %v1097
        %v1099 = vpop.f32.mrb[0].mxu0
        %v1100 = vadd.f32 0.0, %v1099
        %v1101 = vpop.f32.mrb[0].mxu0
        %v1102 = vadd.f32 0.0, %v1101
        %v1103 = vpop.f32.mrb[0].mxu0
        %v1104 = vadd.f32 0.0, %v1103
        %1105 = vdwg.mxu0
        %v1106 = vadd.f32 %v706, %v1088
        %v1107 = vadd.f32 %v708, %v1090
        %v1108 = vadd.f32 %v710, %v1092
        %v1109 = vadd.f32 %v712, %v1094
        %v1110 = vadd.f32 %v716, %v1098
        %v1111 = vadd.f32 %v718, %v1100
        %v1112 = vadd.f32 %v720, %v1102
        %v1113 = vadd.f32 %v722, %v1104
        %s1114 = scalar_lea.vmem %s1, 256
        %v1115 = vld [vmem:[%s1114] sm:$0xf]
        %v1116 = vld [vmem:[%s1114 + $0x4] sm:$0xf]
        %v1117 = vld [vmem:[%s1114 + $0x8] sm:$0xf]
        %v1118 = vld [vmem:[%s1114 + $0xc] sm:$0xf]
        %v1119 = vld [vmem:[%s1114 + $0x10] sm:$0xf]
        %v1120 = vld [vmem:[%s1114 + $0x14] sm:$0xf]
        %v1121 = vld [vmem:[%s1114 + $0x18] sm:$0xf]
        %v1122 = vld [vmem:[%s1114 + $0x1c] sm:$0xf]
        %v1123 = vld [vmem:[%s1114 + $0x20] sm:$0xf]
        %v1124 = vld [vmem:[%s1114 + $0x24] sm:$0xf]
        %v1125 = vld [vmem:[%s1114 + $0x28] sm:$0xf]
        %v1126 = vld [vmem:[%s1114 + $0x2c] sm:$0xf]
        %v1127 = vld [vmem:[%s1114 + $0x30] sm:$0xf]
        %v1128 = vld [vmem:[%s1114 + $0x34] sm:$0xf]
        %v1129 = vld [vmem:[%s1114 + $0x38] sm:$0xf]
        %v1130 = vld [vmem:[%s1114 + $0x3c] sm:$0xf]
        %v1131 = vld [vmem:[%s1114 + $0x40] sm:$0xf]
        %v1132 = vld [vmem:[%s1114 + $0x44] sm:$0xf]
        %v1133 = vld [vmem:[%s1114 + $0x48] sm:$0xf]
        %v1134 = vld [vmem:[%s1114 + $0x4c] sm:$0xf]
        %v1135 = vld [vmem:[%s1114 + $0x50] sm:$0xf]
        %v1136 = vld [vmem:[%s1114 + $0x54] sm:$0xf]
        %v1137 = vld [vmem:[%s1114 + $0x58] sm:$0xf]
        %v1138 = vld [vmem:[%s1114 + $0x5c] sm:$0xf]
        %v1139 = vld [vmem:[%s1114 + $0x60] sm:$0xf]
        %v1140 = vld [vmem:[%s1114 + $0x64] sm:$0xf]
        %v1141 = vld [vmem:[%s1114 + $0x68] sm:$0xf]
        %v1142 = vld [vmem:[%s1114 + $0x6c] sm:$0xf]
        %v1143 = vld [vmem:[%s1114 + $0x70] sm:$0xf]
        %v1144 = vld [vmem:[%s1114 + $0x74] sm:$0xf]
        %v1145 = vld [vmem:[%s1114 + $0x78] sm:$0xf]
        %v1146 = vld [vmem:[%s1114 + $0x7c] sm:$0xf]
        %v1179 = vunpack.c.l.b16 %v1115
        %v1180 = vunpack.c.l.b16 %v1116
        %v1181 = vunpack.c.l.b16 %v1117
        %v1182 = vunpack.c.l.b16 %v1118
        %v1183 = vunpack.c.l.b16 %v1119
        %v1184 = vunpack.c.l.b16 %v1120
        %v1185 = vunpack.c.l.b16 %v1121
        %v1186 = vunpack.c.l.b16 %v1122
        %v1187 = vunpack.c.l.b16 %v1123
        %v1188 = vunpack.c.l.b16 %v1124
        %v1189 = vunpack.c.l.b16 %v1125
        %v1190 = vunpack.c.l.b16 %v1126
        %v1191 = vunpack.c.l.b16 %v1127
        %v1192 = vunpack.c.l.b16 %v1128
        %v1193 = vunpack.c.l.b16 %v1129
        %v1194 = vunpack.c.l.b16 %v1130
        %v1195 = vunpack.c.l.b16 %v1131
        %v1196 = vunpack.c.l.b16 %v1132
        %v1197 = vunpack.c.l.b16 %v1133
        %v1198 = vunpack.c.l.b16 %v1134
        %v1199 = vunpack.c.l.b16 %v1135
        %v1200 = vunpack.c.l.b16 %v1136
        %v1201 = vunpack.c.l.b16 %v1137
        %v1202 = vunpack.c.l.b16 %v1138
        %v1203 = vunpack.c.l.b16 %v1139
        %v1204 = vunpack.c.l.b16 %v1140
        %v1205 = vunpack.c.l.b16 %v1141
        %v1206 = vunpack.c.l.b16 %v1142
        %v1207 = vunpack.c.l.b16 %v1143
        %v1208 = vunpack.c.l.b16 %v1144
        %v1209 = vunpack.c.l.b16 %v1145
        %v1210 = vunpack.c.l.b16 %v1146
        %v1211 = vpack.c.b16 %v1180, %v1179
        %v1212 = vpack.c.b16 %v1182, %v1181
        %v1213 = vpack.c.b16 %v1184, %v1183
        %v1214 = vpack.c.b16 %v1186, %v1185
        %v1215 = vpack.c.b16 %v1188, %v1187
        %v1216 = vpack.c.b16 %v1190, %v1189
        %v1217 = vpack.c.b16 %v1192, %v1191
        %v1218 = vpack.c.b16 %v1194, %v1193
        %v1219 = vpack.c.b16 %v1196, %v1195
        %v1220 = vpack.c.b16 %v1198, %v1197
        %v1221 = vpack.c.b16 %v1200, %v1199
        %v1222 = vpack.c.b16 %v1202, %v1201
        %v1223 = vpack.c.b16 %v1204, %v1203
        %v1224 = vpack.c.b16 %v1206, %v1205
        %v1225 = vpack.c.b16 %v1208, %v1207
        %v1226 = vpack.c.b16 %v1210, %v1209
        %1243 = vmatprep.subr.bf16.mxu0 0
        %1244 = vmatpush1.bf16.msra.mxu0 %v1211
        %1245 = vmatprep.subr.bf16.mxu0 0
        %1246 = vmatpush1.bf16.msra.mxu0 %v1212
        %1247 = vmatprep.subr.bf16.mxu0 0
        %1248 = vmatpush1.bf16.msra.mxu0 %v1213
        %1249 = vmatprep.subr.bf16.mxu0 0
        %1250 = vmatpush1.bf16.msra.mxu0 %v1214
        %1251 = vmatprep.subr.bf16.mxu0 0
        %1252 = vmatpush1.bf16.msra.mxu0 %v1215
        %1253 = vmatprep.subr.bf16.mxu0 0
        %1254 = vmatpush1.bf16.msra.mxu0 %v1216
        %1255 = vmatprep.subr.bf16.mxu0 0
        %1256 = vmatpush1.bf16.msra.mxu0 %v1217
        %1257 = vmatprep.subr.bf16.mxu0 0
        %1258 = vmatpush1.bf16.msra.mxu0 %v1218
        %1259 = vmatprep.subr.bf16.mxu0 0
        %1260 = vmatpush1.bf16.msra.mxu0 %v1219
        %1261 = vmatprep.subr.bf16.mxu0 0
        %1262 = vmatpush1.bf16.msra.mxu0 %v1220
        %1263 = vmatprep.subr.bf16.mxu0 0
        %1264 = vmatpush1.bf16.msra.mxu0 %v1221
        %1265 = vmatprep.subr.bf16.mxu0 0
        %1266 = vmatpush1.bf16.msra.mxu0 %v1222
        %1267 = vmatprep.subr.bf16.mxu0 0
        %1268 = vmatpush1.bf16.msra.mxu0 %v1223
        %1269 = vmatprep.subr.bf16.mxu0 0
        %1270 = vmatpush1.bf16.msra.mxu0 %v1224
        %1271 = vmatprep.subr.bf16.mxu0 0
        %1272 = vmatpush1.bf16.msra.mxu0 %v1225
        %1273 = vmatprep.subr.bf16.mxu0 0
        %1274 = vmatpush1.bf16.msra.mxu0 %v1226
        %1275 = vmatprep.mubr.bf16.mxu0 %v297
        %1276 = vmatmul.mubr.bf16.gmra.mrb[0].mxu0 %v296
        %v1277 = vpop.f32.mrb[0].mxu0
        %v1278 = vadd.f32 0.0, %v1277
        %v1279 = vpop.f32.mrb[0].mxu0
        %v1280 = vpop.f32.mrb[0].mxu0
        %v1281 = vpop.f32.mrb[0].mxu0
        %1282 = vdwg.mxu0
        %s1283 = scalar_lea.vmem %s3, 4
        %v1284 = vld [vmem:[%s1283] sm:$0x3]
        %v1285 = vpack.c.bf16 %v1278, %v1278
        %v1287 = vsel %vm438, %v1284, 0
        %v1290 = vsel %vm442, %v1285, 0
        %1292 = vmatprep.subr.bf16.mxu0 0
        %1293 = vmatpush1.bf16.msra.mxu0 %v1290
        %1294 = vmatprep.subr.bf16.mxu0 0
        %1295 = vmatpush1.bf16.msra.mxu0 0
        %1296 = vmatprep.subr.bf16.mxu0 0
        %1297 = vmatpush1.bf16.msra.mxu0 0
        %1298 = vmatprep.subr.bf16.mxu0 0
        %1299 = vmatpush1.bf16.msra.mxu0 0
        %1300 = vmatprep.subr.bf16.mxu0 0
        %1301 = vmatpush1.bf16.msra.mxu0 0
        %1302 = vmatprep.subr.bf16.mxu0 0
        %1303 = vmatpush1.bf16.msra.mxu0 0
        %1304 = vmatprep.subr.bf16.mxu0 0
        %1305 = vmatpush1.bf16.msra.mxu0 0
        %1306 = vmatprep.subr.bf16.mxu0 0
        %1307 = vmatpush1.bf16.msra.mxu0 0
        %1308 = vmatprep.subr.bf16.mxu0 0
        %1309 = vmatpush1.bf16.msra.mxu0 0
        %1310 = vmatprep.subr.bf16.mxu0 0
        %1311 = vmatpush1.bf16.msra.mxu0 0
        %1312 = vmatprep.subr.bf16.mxu0 0
        %1313 = vmatpush1.bf16.msra.mxu0 0
        %1314 = vmatprep.subr.bf16.mxu0 0
        %1315 = vmatpush1.bf16.msra.mxu0 0
        %1316 = vmatprep.subr.bf16.mxu0 0
        %1317 = vmatpush1.bf16.msra.mxu0 0
        %1318 = vmatprep.subr.bf16.mxu0 0
        %1319 = vmatpush1.bf16.msra.mxu0 0
        %1320 = vmatprep.subr.bf16.mxu0 0
        %1321 = vmatpush1.bf16.msra.mxu0 0
        %1322 = vmatprep.subr.bf16.mxu0 0
        %1323 = vmatpush1.bf16.msra.mxu0 0
        %1324 = vmatprep.mubr.bf16.mxu0 0
        %1325 = vmatmul.mubr.bf16.gmra.mrb[0].mxu0 %v1287
        %v1326 = vpop.f32.mrb[0].mxu0
        %v1327 = vadd.f32 0.0, %v1326
        %v1328 = vpop.f32.mrb[0].mxu0
        %v1329 = vpop.f32.mrb[0].mxu0
        %v1330 = vpop.f32.mrb[0].mxu0
        %1331 = vdwg.mxu0
        %v1332 = vpack.c.bf16 %v1327, %v1327
        %s1333 = scalar_lea.vmem %s2, 80
        %v1334 = vld [vmem:[%s1333] sm:$0xff]
        %v1335 = vld [vmem:[%s1333 + $0x8] sm:$0xff]
        %v1336 = vld [vmem:[%s1333 + $0x10] sm:$0xff]
        %v1337 = vld [vmem:[%s1333 + $0x18] sm:$0xff]
        %v1338 = vld [vmem:[%s1333 + $0x20] sm:$0x33]
        %v1344 = vunpack.c.l.b16 %v1334
        %v1345 = vunpack.c.h.b16 %v1334
        %v1346 = vunpack.c.l.b16 %v1335
        %v1347 = vunpack.c.h.b16 %v1335
        %v1348 = vunpack.c.l.b16 %v1336
        %v1349 = vunpack.c.h.b16 %v1336
        %v1350 = vunpack.c.l.b16 %v1337
        %v1351 = vunpack.c.h.b16 %v1337
        %v1352 = vunpack.c.l.b16 %v1338
        %v1353 = vunpack.c.h.b16 %v1338
        %v1354 = vpack.c.b16 %v1346, %v1344
        %v1355 = vpack.c.b16 %v1347, %v1345
        %v1356 = vpack.c.b16 %v1350, %v1348
        %v1357 = vpack.c.b16 %v1351, %v1349
        %v1358 = vpack.c.b16 %v1352, %v1352
        %v1359 = vpack.c.b16 %v1353, %v1353
        %v1365 = vsel %vm517, %v1332, 0
        %v1368 = vsel %vm442, %v1358, 0
        %v1371 = vsel %vm442, %v1359, 0
        %1373 = vmatprep.subr.bf16.mxu0 %v1355
        %1374 = vmatpush1.bf16.msra.mxu0 %v1354
        %1375 = vmatprep.subr.bf16.mxu0 %v1357
        %1376 = vmatpush1.bf16.msra.mxu0 %v1356
        %1377 = vmatprep.subr.bf16.mxu0 %v1371
        %1378 = vmatpush1.bf16.msra.mxu0 %v1368
        %1379 = vmatprep.subr.bf16.mxu0 0
        %1380 = vmatpush1.bf16.msra.mxu0 0
        %1381 = vmatprep.subr.bf16.mxu0 0
        %1382 = vmatpush1.bf16.msra.mxu0 0
        %1383 = vmatprep.subr.bf16.mxu0 0
        %1384 = vmatpush1.bf16.msra.mxu0 0
        %1385 = vmatprep.subr.bf16.mxu0 0
        %1386 = vmatpush1.bf16.msra.mxu0 0
        %1387 = vmatprep.subr.bf16.mxu0 0
        %1388 = vmatpush1.bf16.msra.mxu0 0
        %1389 = vmatprep.subr.bf16.mxu0 0
        %1390 = vmatpush1.bf16.msra.mxu0 0
        %1391 = vmatprep.subr.bf16.mxu0 0
        %1392 = vmatpush1.bf16.msra.mxu0 0
        %1393 = vmatprep.subr.bf16.mxu0 0
        %1394 = vmatpush1.bf16.msra.mxu0 0
        %1395 = vmatprep.subr.bf16.mxu0 0
        %1396 = vmatpush1.bf16.msra.mxu0 0
        %1397 = vmatprep.subr.bf16.mxu0 0
        %1398 = vmatpush1.bf16.msra.mxu0 0
        %1399 = vmatprep.subr.bf16.mxu0 0
        %1400 = vmatpush1.bf16.msra.mxu0 0
        %1401 = vmatprep.subr.bf16.mxu0 0
        %1402 = vmatpush1.bf16.msra.mxu0 0
        %1403 = vmatprep.subr.bf16.mxu0 0
        %1404 = vmatpush1.bf16.msra.mxu0 0
        %1405 = vmatprep.mubr.bf16.mxu0 0
        %1406 = vmatmul.mubr.bf16.gmra.mrb[0].mxu0 %v1365
        %v1407 = vpop.f32.mrb[0].mxu0
        %v1408 = vadd.f32 0.0, %v1407
        %v1409 = vpop.f32.mrb[0].mxu0
        %v1410 = vadd.f32 0.0, %v1409
        %v1411 = vpop.f32.mrb[0].mxu0
        %v1412 = vpop.f32.mrb[0].mxu0
        %1413 = vdwg.mxu0
        %s1414 = scalar_lea.vmem %s4, 32
        %v1415 = vld [vmem:[%s1414] sm:$0xf]
        %v1416 = vld [vmem:[%s1414 + $0x4] sm:$0xf]
        %v1417 = vld [vmem:[%s1414 + $0x8] sm:$0xf]
        %v1418 = vld [vmem:[%s1414 + $0xc] sm:$0xf]
        %v1419 = vpack.c.bf16 %v1408, %v1408
        %v1420 = vpack.c.bf16 %v1410, %v1410
        %v1425 = vunpack.c.l.b16 %v1415
        %v1426 = vunpack.c.l.b16 %v1416
        %v1427 = vunpack.c.l.b16 %v1417
        %v1428 = vunpack.c.l.b16 %v1418
        %v1429 = vpack.c.b16 %v1426, %v1425
        %v1430 = vpack.c.b16 %v1428, %v1427
        %v1432 = vsel %vm438, %v1429, 0
        %v1435 = vsel %vm438, %v1430, 0
        %v1438 = vsel %vm442, %v1419, 0
        %v1441 = vsel %vm442, %v1420, 0
        %1443 = vmatprep.subr.bf16.mxu0 %v1441
        %1444 = vmatpush1.bf16.msra.mxu0 %v1438
        %1445 = vmatprep.subr.bf16.mxu0 0
        %1446 = vmatpush1.bf16.msra.mxu0 0
        %1447 = vmatprep.subr.bf16.mxu0 0
        %1448 = vmatpush1.bf16.msra.mxu0 0
        %1449 = vmatprep.subr.bf16.mxu0 0
        %1450 = vmatpush1.bf16.msra.mxu0 0
        %1451 = vmatprep.subr.bf16.mxu0 0
        %1452 = vmatpush1.bf16.msra.mxu0 0
        %1453 = vmatprep.subr.bf16.mxu0 0
        %1454 = vmatpush1.bf16.msra.mxu0 0
        %1455 = vmatprep.subr.bf16.mxu0 0
        %1456 = vmatpush1.bf16.msra.mxu0 0
        %1457 = vmatprep.subr.bf16.mxu0 0
        %1458 = vmatpush1.bf16.msra.mxu0 0
        %1459 = vmatprep.subr.bf16.mxu0 0
        %1460 = vmatpush1.bf16.msra.mxu0 0
        %1461 = vmatprep.subr.bf16.mxu0 0
        %1462 = vmatpush1.bf16.msra.mxu0 0
        %1463 = vmatprep.subr.bf16.mxu0 0
        %1464 = vmatpush1.bf16.msra.mxu0 0
        %1465 = vmatprep.subr.bf16.mxu0 0
        %1466 = vmatpush1.bf16.msra.mxu0 0
        %1467 = vmatprep.subr.bf16.mxu0 0
        %1468 = vmatpush1.bf16.msra.mxu0 0
        %1469 = vmatprep.subr.bf16.mxu0 0
        %1470 = vmatpush1.bf16.msra.mxu0 0
        %1471 = vmatprep.subr.bf16.mxu0 0
        %1472 = vmatpush1.bf16.msra.mxu0 0
        %1473 = vmatprep.subr.bf16.mxu0 0
        %1474 = vmatpush1.bf16.msra.mxu0 0
        %1475 = vmatprep.mubr.bf16.mxu0 0
        %1476 = vmatmul.mubr.bf16.gmra.mrb[0].mxu0 %v1432
        %v1477 = vpop.f32.mrb[0].mxu0
        %v1478 = vadd.f32 0.0, %v1477
        %v1479 = vpop.f32.mrb[0].mxu0
        %v1480 = vadd.f32 0.0, %v1479
        %v1481 = vpop.f32.mrb[0].mxu0
        %v1482 = vadd.f32 0.0, %v1481
        %v1483 = vpop.f32.mrb[0].mxu0
        %v1484 = vadd.f32 0.0, %v1483
        %1485 = vmatprep.mubr.bf16.mxu0 0
        %1486 = vmatmul.mubr.bf16.gmra.mrb[0].mxu0 %v1435
        %v1487 = vpop.f32.mrb[0].mxu0
        %v1488 = vadd.f32 0.0, %v1487
        %v1489 = vpop.f32.mrb[0].mxu0
        %v1490 = vadd.f32 0.0, %v1489
        %v1491 = vpop.f32.mrb[0].mxu0
        %v1492 = vadd.f32 0.0, %v1491
        %v1493 = vpop.f32.mrb[0].mxu0
        %v1494 = vadd.f32 0.0, %v1493
        %1495 = vdwg.mxu0
        %v1496 = vadd.f32 %v1106, %v1478
        %v1497 = vadd.f32 %v1107, %v1480
        %v1498 = vadd.f32 %v1108, %v1482
        %v1499 = vadd.f32 %v1109, %v1484
        %v1500 = vadd.f32 %v1110, %v1488
        %v1501 = vadd.f32 %v1111, %v1490
        %v1502 = vadd.f32 %v1112, %v1492
        %v1503 = vadd.f32 %v1113, %v1494
        %s1504 = scalar_lea.vmem %s1, 384
        %v1505 = vld [vmem:[%s1504] sm:$0xf]
        %v1506 = vld [vmem:[%s1504 + $0x4] sm:$0xf]
        %v1507 = vld [vmem:[%s1504 + $0x8] sm:$0xf]
        %v1508 = vld [vmem:[%s1504 + $0xc] sm:$0xf]
        %v1509 = vld [vmem:[%s1504 + $0x10] sm:$0xf]
        %v1510 = vld [vmem:[%s1504 + $0x14] sm:$0xf]
        %v1511 = vld [vmem:[%s1504 + $0x18] sm:$0xf]
        %v1512 = vld [vmem:[%s1504 + $0x1c] sm:$0xf]
        %v1513 = vld [vmem:[%s1504 + $0x20] sm:$0xf]
        %v1514 = vld [vmem:[%s1504 + $0x24] sm:$0xf]
        %v1515 = vld [vmem:[%s1504 + $0x28] sm:$0xf]
        %v1516 = vld [vmem:[%s1504 + $0x2c] sm:$0xf]
        %v1517 = vld [vmem:[%s1504 + $0x30] sm:$0xf]
        %v1518 = vld [vmem:[%s1504 + $0x34] sm:$0xf]
        %v1519 = vld [vmem:[%s1504 + $0x38] sm:$0xf]
        %v1520 = vld [vmem:[%s1504 + $0x3c] sm:$0xf]
        %v1521 = vld [vmem:[%s1504 + $0x40] sm:$0xf]
        %v1522 = vld [vmem:[%s1504 + $0x44] sm:$0xf]
        %v1523 = vld [vmem:[%s1504 + $0x48] sm:$0xf]
        %v1524 = vld [vmem:[%s1504 + $0x4c] sm:$0xf]
        %v1525 = vld [vmem:[%s1504 + $0x50] sm:$0xf]
        %v1526 = vld [vmem:[%s1504 + $0x54] sm:$0xf]
        %v1527 = vld [vmem:[%s1504 + $0x58] sm:$0xf]
        %v1528 = vld [vmem:[%s1504 + $0x5c] sm:$0xf]
        %v1529 = vld [vmem:[%s1504 + $0x60] sm:$0xf]
        %v1530 = vld [vmem:[%s1504 + $0x64] sm:$0xf]
        %v1531 = vld [vmem:[%s1504 + $0x68] sm:$0xf]
        %v1532 = vld [vmem:[%s1504 + $0x6c] sm:$0xf]
        %v1533 = vld [vmem:[%s1504 + $0x70] sm:$0xf]
        %v1534 = vld [vmem:[%s1504 + $0x74] sm:$0xf]
        %v1535 = vld [vmem:[%s1504 + $0x78] sm:$0xf]
        %v1536 = vld [vmem:[%s1504 + $0x7c] sm:$0xf]
        %v1569 = vunpack.c.l.b16 %v1505
        %v1570 = vunpack.c.l.b16 %v1506
        %v1571 = vunpack.c.l.b16 %v1507
        %v1572 = vunpack.c.l.b16 %v1508
        %v1573 = vunpack.c.l.b16 %v1509
        %v1574 = vunpack.c.l.b16 %v1510
        %v1575 = vunpack.c.l.b16 %v1511
        %v1576 = vunpack.c.l.b16 %v1512
        %v1577 = vunpack.c.l.b16 %v1513
        %v1578 = vunpack.c.l.b16 %v1514
        %v1579 = vunpack.c.l.b16 %v1515
        %v1580 = vunpack.c.l.b16 %v1516
        %v1581 = vunpack.c.l.b16 %v1517
        %v1582 = vunpack.c.l.b16 %v1518
        %v1583 = vunpack.c.l.b16 %v1519
        %v1584 = vunpack.c.l.b16 %v1520
        %v1585 = vunpack.c.l.b16 %v1521
        %v1586 = vunpack.c.l.b16 %v1522
        %v1587 = vunpack.c.l.b16 %v1523
        %v1588 = vunpack.c.l.b16 %v1524
        %v1589 = vunpack.c.l.b16 %v1525
        %v1590 = vunpack.c.l.b16 %v1526
        %v1591 = vunpack.c.l.b16 %v1527
        %v1592 = vunpack.c.l.b16 %v1528
        %v1593 = vunpack.c.l.b16 %v1529
        %v1594 = vunpack.c.l.b16 %v1530
        %v1595 = vunpack.c.l.b16 %v1531
        %v1596 = vunpack.c.l.b16 %v1532
        %v1597 = vunpack.c.l.b16 %v1533
        %v1598 = vunpack.c.l.b16 %v1534
        %v1599 = vunpack.c.l.b16 %v1535
        %v1600 = vunpack.c.l.b16 %v1536
        %v1601 = vpack.c.b16 %v1570, %v1569
        %v1602 = vpack.c.b16 %v1572, %v1571
        %v1603 = vpack.c.b16 %v1574, %v1573
        %v1604 = vpack.c.b16 %v1576, %v1575
        %v1605 = vpack.c.b16 %v1578, %v1577
        %v1606 = vpack.c.b16 %v1580, %v1579
        %v1607 = vpack.c.b16 %v1582, %v1581
        %v1608 = vpack.c.b16 %v1584, %v1583
        %v1609 = vpack.c.b16 %v1586, %v1585
        %v1610 = vpack.c.b16 %v1588, %v1587
        %v1611 = vpack.c.b16 %v1590, %v1589
        %v1612 = vpack.c.b16 %v1592, %v1591
        %v1613 = vpack.c.b16 %v1594, %v1593
        %v1614 = vpack.c.b16 %v1596, %v1595
        %v1615 = vpack.c.b16 %v1598, %v1597
        %v1616 = vpack.c.b16 %v1600, %v1599
        %1633 = vmatprep.subr.bf16.mxu0 0
        %1634 = vmatpush1.bf16.msra.mxu0 %v1601
        %1635 = vmatprep.subr.bf16.mxu0 0
        %1636 = vmatpush1.bf16.msra.mxu0 %v1602
        %1637 = vmatprep.subr.bf16.mxu0 0
        %1638 = vmatpush1.bf16.msra.mxu0 %v1603
        %1639 = vmatprep.subr.bf16.mxu0 0
        %1640 = vmatpush1.bf16.msra.mxu0 %v1604
        %1641 = vmatprep.subr.bf16.mxu0 0
        %1642 = vmatpush1.bf16.msra.mxu0 %v1605
        %1643 = vmatprep.subr.bf16.mxu0 0
        %1644 = vmatpush1.bf16.msra.mxu0 %v1606
        %1645 = vmatprep.subr.bf16.mxu0 0
        %1646 = vmatpush1.bf16.msra.mxu0 %v1607
        %1647 = vmatprep.subr.bf16.mxu0 0
        %1648 = vmatpush1.bf16.msra.mxu0 %v1608
        %1649 = vmatprep.subr.bf16.mxu0 0
        %1650 = vmatpush1.bf16.msra.mxu0 %v1609
        %1651 = vmatprep.subr.bf16.mxu0 0
        %1652 = vmatpush1.bf16.msra.mxu0 %v1610
        %1653 = vmatprep.subr.bf16.mxu0 0
        %1654 = vmatpush1.bf16.msra.mxu0 %v1611
        %1655 = vmatprep.subr.bf16.mxu0 0
        %1656 = vmatpush1.bf16.msra.mxu0 %v1612
        %1657 = vmatprep.subr.bf16.mxu0 0
        %1658 = vmatpush1.bf16.msra.mxu0 %v1613
        %1659 = vmatprep.subr.bf16.mxu0 0
        %1660 = vmatpush1.bf16.msra.mxu0 %v1614
        %1661 = vmatprep.subr.bf16.mxu0 0
        %1662 = vmatpush1.bf16.msra.mxu0 %v1615
        %1663 = vmatprep.subr.bf16.mxu0 0
        %1664 = vmatpush1.bf16.msra.mxu0 %v1616
        %1665 = vmatprep.mubr.bf16.mxu0 %v297
        %1666 = vmatmul.mubr.bf16.gmra.mrb[0].mxu0 %v296
        %v1667 = vpop.f32.mrb[0].mxu0
        %v1668 = vadd.f32 0.0, %v1667
        %v1669 = vpop.f32.mrb[0].mxu0
        %v1670 = vpop.f32.mrb[0].mxu0
        %v1671 = vpop.f32.mrb[0].mxu0
        %1672 = vdwg.mxu0
        %s1673 = scalar_lea.vmem %s3, 6
        %v1674 = vld [vmem:[%s1673] sm:$0x3]
        %v1675 = vpack.c.bf16 %v1668, %v1668
        %v1677 = vsel %vm438, %v1674, 0
        %v1680 = vsel %vm442, %v1675, 0
        %1682 = vmatprep.subr.bf16.mxu0 0
        %1683 = vmatpush1.bf16.msra.mxu0 %v1680
        %1684 = vmatprep.subr.bf16.mxu0 0
        %1685 = vmatpush1.bf16.msra.mxu0 0
        %1686 = vmatprep.subr.bf16.mxu0 0
        %1687 = vmatpush1.bf16.msra.mxu0 0
        %1688 = vmatprep.subr.bf16.mxu0 0
        %1689 = vmatpush1.bf16.msra.mxu0 0
        %1690 = vmatprep.subr.bf16.mxu0 0
        %1691 = vmatpush1.bf16.msra.mxu0 0
        %1692 = vmatprep.subr.bf16.mxu0 0
        %1693 = vmatpush1.bf16.msra.mxu0 0
        %1694 = vmatprep.subr.bf16.mxu0 0
        %1695 = vmatpush1.bf16.msra.mxu0 0
        %1696 = vmatprep.subr.bf16.mxu0 0
        %1697 = vmatpush1.bf16.msra.mxu0 0
        %1698 = vmatprep.subr.bf16.mxu0 0
        %1699 = vmatpush1.bf16.msra.mxu0 0
        %1700 = vmatprep.subr.bf16.mxu0 0
        %1701 = vmatpush1.bf16.msra.mxu0 0
        %1702 = vmatprep.subr.bf16.mxu0 0
        %1703 = vmatpush1.bf16.msra.mxu0 0
        %1704 = vmatprep.subr.bf16.mxu0 0
        %1705 = vmatpush1.bf16.msra.mxu0 0
        %1706 = vmatprep.subr.bf16.mxu0 0
        %1707 = vmatpush1.bf16.msra.mxu0 0
        %1708 = vmatprep.subr.bf16.mxu0 0
        %1709 = vmatpush1.bf16.msra.mxu0 0
        %1710 = vmatprep.subr.bf16.mxu0 0
        %1711 = vmatpush1.bf16.msra.mxu0 0
        %1712 = vmatprep.subr.bf16.mxu0 0
        %1713 = vmatpush1.bf16.msra.mxu0 0
        %1714 = vmatprep.mubr.bf16.mxu0 0
        %1715 = vmatmul.mubr.bf16.gmra.mrb[0].mxu0 %v1677
        %v1716 = vpop.f32.mrb[0].mxu0
        %v1717 = vadd.f32 0.0, %v1716
        %v1718 = vpop.f32.mrb[0].mxu0
        %v1719 = vpop.f32.mrb[0].mxu0
        %v1720 = vpop.f32.mrb[0].mxu0
        %1721 = vdwg.mxu0
        %v1722 = vpack.c.bf16 %v1717, %v1717
        %s1723 = scalar_lea.vmem %s2, 120
        %v1724 = vld [vmem:[%s1723] sm:$0xff]
        %v1725 = vld [vmem:[%s1723 + $0x8] sm:$0xff]
        %v1726 = vld [vmem:[%s1723 + $0x10] sm:$0xff]
        %v1727 = vld [vmem:[%s1723 + $0x18] sm:$0xff]
        %v1728 = vld [vmem:[%s1723 + $0x20] sm:$0x33]
        %v1734 = vunpack.c.l.b16 %v1724
        %v1735 = vunpack.c.h.b16 %v1724
        %v1736 = vunpack.c.l.b16 %v1725
        %v1737 = vunpack.c.h.b16 %v1725
        %v1738 = vunpack.c.l.b16 %v1726
        %v1739 = vunpack.c.h.b16 %v1726
        %v1740 = vunpack.c.l.b16 %v1727
        %v1741 = vunpack.c.h.b16 %v1727
        %v1742 = vunpack.c.l.b16 %v1728
        %v1743 = vunpack.c.h.b16 %v1728
        %v1744 = vpack.c.b16 %v1736, %v1734
        %v1745 = vpack.c.b16 %v1737, %v1735
        %v1746 = vpack.c.b16 %v1740, %v1738
        %v1747 = vpack.c.b16 %v1741, %v1739
        %v1748 = vpack.c.b16 %v1742, %v1742
        %v1749 = vpack.c.b16 %v1743, %v1743
        %v1755 = vsel %vm517, %v1722, 0
        %v1758 = vsel %vm442, %v1748, 0
        %v1761 = vsel %vm442, %v1749, 0
        %1763 = vmatprep.subr.bf16.mxu0 %v1745
        %1764 = vmatpush1.bf16.msra.mxu0 %v1744
        %1765 = vmatprep.subr.bf16.mxu0 %v1747
        %1766 = vmatpush1.bf16.msra.mxu0 %v1746
        %1767 = vmatprep.subr.bf16.mxu0 %v1761
        %1768 = vmatpush1.bf16.msra.mxu0 %v1758
        %1769 = vmatprep.subr.bf16.mxu0 0
        %1770 = vmatpush1.bf16.msra.mxu0 0
        %1771 = vmatprep.subr.bf16.mxu0 0
        %1772 = vmatpush1.bf16.msra.mxu0 0
        %1773 = vmatprep.subr.bf16.mxu0 0
        %1774 = vmatpush1.bf16.msra.mxu0 0
        %1775 = vmatprep.subr.bf16.mxu0 0
        %1776 = vmatpush1.bf16.msra.mxu0 0
        %1777 = vmatprep.subr.bf16.mxu0 0
        %1778 = vmatpush1.bf16.msra.mxu0 0
        %1779 = vmatprep.subr.bf16.mxu0 0
        %1780 = vmatpush1.bf16.msra.mxu0 0
        %1781 = vmatprep.subr.bf16.mxu0 0
        %1782 = vmatpush1.bf16.msra.mxu0 0
        %1783 = vmatprep.subr.bf16.mxu0 0
        %1784 = vmatpush1.bf16.msra.mxu0 0
        %1785 = vmatprep.subr.bf16.mxu0 0
        %1786 = vmatpush1.bf16.msra.mxu0 0
        %1787 = vmatprep.subr.bf16.mxu0 0
        %1788 = vmatpush1.bf16.msra.mxu0 0
        %1789 = vmatprep.subr.bf16.mxu0 0
        %1790 = vmatpush1.bf16.msra.mxu0 0
        %1791 = vmatprep.subr.bf16.mxu0 0
        %1792 = vmatpush1.bf16.msra.mxu0 0
        %1793 = vmatprep.subr.bf16.mxu0 0
        %1794 = vmatpush1.bf16.msra.mxu0 0
        %1795 = vmatprep.mubr.bf16.mxu0 0
        %1796 = vmatmul.mubr.bf16.gmra.mrb[0].mxu0 %v1755
        %v1797 = vpop.f32.mrb[0].mxu0
        %v1798 = vadd.f32 0.0, %v1797
        %v1799 = vpop.f32.mrb[0].mxu0
        %v1800 = vadd.f32 0.0, %v1799
        %v1801 = vpop.f32.mrb[0].mxu0
        %v1802 = vpop.f32.mrb[0].mxu0
        %1803 = vdwg.mxu0
        %s1804 = scalar_lea.vmem %s4, 48
        %v1805 = vld [vmem:[%s1804] sm:$0xf]
        %v1806 = vld [vmem:[%s1804 + $0x4] sm:$0xf]
        %v1807 = vld [vmem:[%s1804 + $0x8] sm:$0xf]
        %v1808 = vld [vmem:[%s1804 + $0xc] sm:$0xf]
        %v1809 = vpack.c.bf16 %v1798, %v1798
        %v1810 = vpack.c.bf16 %v1800, %v1800
        %v1815 = vunpack.c.l.b16 %v1805
        %v1816 = vunpack.c.l.b16 %v1806
        %v1817 = vunpack.c.l.b16 %v1807
        %v1818 = vunpack.c.l.b16 %v1808
        %v1819 = vpack.c.b16 %v1816, %v1815
        %v1820 = vpack.c.b16 %v1818, %v1817
        %v1822 = vsel %vm438, %v1819, 0
        %v1825 = vsel %vm438, %v1820, 0
        %v1828 = vsel %vm442, %v1809, 0
        %v1831 = vsel %vm442, %v1810, 0
        %1833 = vmatprep.subr.bf16.mxu0 %v1831
        %1834 = vmatpush1.bf16.msra.mxu0 %v1828
        %1835 = vmatprep.subr.bf16.mxu0 0
        %1836 = vmatpush1.bf16.msra.mxu0 0
        %1837 = vmatprep.subr.bf16.mxu0 0
        %1838 = vmatpush1.bf16.msra.mxu0 0
        %1839 = vmatprep.subr.bf16.mxu0 0
        %1840 = vmatpush1.bf16.msra.mxu0 0
        %1841 = vmatprep.subr.bf16.mxu0 0
        %1842 = vmatpush1.bf16.msra.mxu0 0
        %1843 = vmatprep.subr.bf16.mxu0 0
        %1844 = vmatpush1.bf16.msra.mxu0 0
        %1845 = vmatprep.subr.bf16.mxu0 0
        %1846 = vmatpush1.bf16.msra.mxu0 0
        %1847 = vmatprep.subr.bf16.mxu0 0
        %1848 = vmatpush1.bf16.msra.mxu0 0
        %1849 = vmatprep.subr.bf16.mxu0 0
        %1850 = vmatpush1.bf16.msra.mxu0 0
        %1851 = vmatprep.subr.bf16.mxu0 0
        %1852 = vmatpush1.bf16.msra.mxu0 0
        %1853 = vmatprep.subr.bf16.mxu0 0
        %1854 = vmatpush1.bf16.msra.mxu0 0
        %1855 = vmatprep.subr.bf16.mxu0 0
        %1856 = vmatpush1.bf16.msra.mxu0 0
        %1857 = vmatprep.subr.bf16.mxu0 0
        %1858 = vmatpush1.bf16.msra.mxu0 0
        %1859 = vmatprep.subr.bf16.mxu0 0
        %1860 = vmatpush1.bf16.msra.mxu0 0
        %1861 = vmatprep.subr.bf16.mxu0 0
        %1862 = vmatpush1.bf16.msra.mxu0 0
        %1863 = vmatprep.subr.bf16.mxu0 0
        %1864 = vmatpush1.bf16.msra.mxu0 0
        %1865 = vmatprep.mubr.bf16.mxu0 0
        %1866 = vmatmul.mubr.bf16.gmra.mrb[0].mxu0 %v1822
        %v1867 = vpop.f32.mrb[0].mxu0
        %v1868 = vadd.f32 0.0, %v1867
        %v1869 = vpop.f32.mrb[0].mxu0
        %v1870 = vadd.f32 0.0, %v1869
        %v1871 = vpop.f32.mrb[0].mxu0
        %v1872 = vadd.f32 0.0, %v1871
        %v1873 = vpop.f32.mrb[0].mxu0
        %v1874 = vadd.f32 0.0, %v1873
        %1875 = vmatprep.mubr.bf16.mxu0 0
        %1876 = vmatmul.mubr.bf16.gmra.mrb[0].mxu0 %v1825
        %v1877 = vpop.f32.mrb[0].mxu0
        %v1878 = vadd.f32 0.0, %v1877
        %v1879 = vpop.f32.mrb[0].mxu0
        %v1880 = vadd.f32 0.0, %v1879
        %v1881 = vpop.f32.mrb[0].mxu0
        %v1882 = vadd.f32 0.0, %v1881
        %v1883 = vpop.f32.mrb[0].mxu0
        %v1884 = vadd.f32 0.0, %v1883
        %1885 = vdwg.mxu0
        %v1886 = vadd.f32 %v1496, %v1868
        %v1887 = vadd.f32 %v1497, %v1870
        %v1888 = vadd.f32 %v1498, %v1872
        %v1889 = vadd.f32 %v1499, %v1874
        %v1890 = vadd.f32 %v1500, %v1878
        %v1891 = vadd.f32 %v1501, %v1880
        %v1892 = vadd.f32 %v1502, %v1882
        %v1893 = vadd.f32 %v1503, %v1884
        %v1894 = vld [vmem:[%s5] sm:$0xff]
        %v1895 = vld [vmem:[%s5 + $0x8] sm:$0xff]
        %v1896 = vld [vmem:[%s5 + $0x10] sm:$0xff]
        %v1897 = vld [vmem:[%s5 + $0x18] sm:$0xff]
        %1899 = vset.pattern.permute.xlu0 0
        %1900 = vperm.xlu0 %1899, %v1894
        %v1901 = vpop.permute.xlu0 %1900
        %1904 = vset.pattern.permute.xlu0 0
        %1905 = vperm.xlu0 %1904, %v1895
        %v1906 = vpop.permute.xlu0 %1905
        %1909 = vset.pattern.permute.xlu0 0
        %1910 = vperm.xlu0 %1909, %v1896
        %v1911 = vpop.permute.xlu0 %1910
        %1914 = vset.pattern.permute.xlu0 0
        %1915 = vperm.xlu0 %1914, %v1897
        %v1916 = vpop.permute.xlu0 %1915
        %v1918 = vadd.f32 %v1886, %v1901
        %v1919 = vadd.f32 %v1887, %v1901
        %v1920 = vadd.f32 %v1888, %v1906
        %v1921 = vadd.f32 %v1889, %v1906
        %v1922 = vadd.f32 %v1890, %v1911
        %v1923 = vadd.f32 %v1891, %v1911
        %v1924 = vadd.f32 %v1892, %v1916
        %v1925 = vadd.f32 %v1893, %v1916
        %v1926 = vmax.f32 %v1918, 0.0
        %v1927 = vmax.f32 %v1919, 0.0
        %v1928 = vmax.f32 %v1920, 0.0
        %v1929 = vmax.f32 %v1921, 0.0
        %v1930 = vmax.f32 %v1922, 0.0
        %v1931 = vmax.f32 %v1923, 0.0
        %v1932 = vmax.f32 %v1924, 0.0
        %v1933 = vmax.f32 %v1925, 0.0
        %1934 = vst [vmem:[%s244] sm:$0xff] %v1926
        %1935 = vst [vmem:[%s244 + $0x8] sm:$0xff] %v1927
        %1936 = vst [vmem:[%s244 + $0x10] sm:$0xff] %v1928
        %1937 = vst [vmem:[%s244 + $0x18] sm:$0xff] %v1929
        %1938 = vst [vmem:[%s244 + $0x20] sm:$0xff] %v1930
        %1939 = vst [vmem:[%s244 + $0x28] sm:$0xff] %v1931
        %1940 = vst [vmem:[%s244 + $0x30] sm:$0xff] %v1932
        %1941 = vst [vmem:[%s244 + $0x38] sm:$0xff] %v1933
        %s1942 = sand.u32 %s159, 1
        %s1943 = scalar_lea.sflag [#allocation3], %s1942
        %s1944 = sand.u32 %s159, 1
        %s1945 = smul.addr %s1944, 64
        %s1946 = scalar_lea.vmem [#allocation2], %s1945
        // Predicated region
        $region45: #{tpu_custom_call.1} parent=43 // pred_check
          %p1947 = pneg %p169
        $region46: #{tpu_custom_call.1} parent=43 // pred_check_branch
          %1949 = sbr.rel (%p1947) target = $region48
        $region47: #{tpu_custom_call.1} parent=43 // pred_region
          %s1951 = ssub.s32 1024, 1024
          %1952 = vsyncadd %s1943, %s1951
          %s1953 = smul.addr %s20, 8
          %s1954 = smul.addr %s1953, 128
          %s1955 = scalar_lea.hbm %s6, %s1954
          %s1956 = sshll.u32 %s1946, 4
          %s1957 = int_to_ptr.vmem [resolvable:$true] %s1956
          %1962 = dma.vmem_to_hbm [thread:$0]  %s1957, 1024, %s1955, %s1943, 256, 256, 16
        $region48: #{tpu_custom_call.1} parent=43 // pred_fallthru
          _
      $region44: #{tpu_custom_call.1} parent=5 // pred_fallthru
        _
      %p1963 = scmp.le.s32.totalorder 2, %s15
      // Predicated region
      $region49: #{tpu_custom_call.1} parent=5 // pred_check
        %p1964 = pneg %p1963
      $region50: #{tpu_custom_call.1} parent=5 // pred_check_branch
        %1966 = sbr.rel (%p1964) target = $region52
      $region51: #{tpu_custom_call.1} parent=5 // pred_region
        %s1967 = ssub.s32 %s15, 2
        // Predicated region
        $region53: #{tpu_custom_call.1} parent=51 // pred_check
          %p1968 = pneg %p175
        $region54: #{tpu_custom_call.1} parent=51 // pred_check_branch
          %1970 = sbr.rel (%p1968) target = $region56
        $region55: #{tpu_custom_call.1} parent=51 // pred_region
          %s1971 = sand.u32 %s160, 1
          %s1972 = scalar_lea.sflag [#allocation3], %s1971
          %s1973 = sand.u32 %s160, 1
          %s1974 = smul.addr %s1973, 64
          %s1975 = scalar_lea.vmem [#allocation2], %s1974
          %1976 = dma.done %s1972, 1024
        $region56: #{tpu_custom_call.1} parent=51 // pred_fallthru
          _
      $region52: #{tpu_custom_call.1} parent=5 // pred_fallthru
        _
    $region6: #{tpu_custom_call.1} parent=1 // loop_footer
      %s19 = sadd.s32 1, %s15
    $region7: #{tpu_custom_call.1} parent=1 // loop_footer_branch
      %14 = sbr.rel target = $region3
    $region8: #{tpu_custom_call.1} parent=1 // loop_exit
      _
    %1977 = vsyncpa [#allocation3], 1
    %s1978 = scalar_lea.sflag [#allocation3], 1
    %1979 = vsyncpa %s1978, 1

</llo_original>
